<compile_context>
chip_gen: v7x
topology: tpu7x:2x2x1
jax: 0.10.0
libtpu: 0.0.40
codegen_flags: <defaults>
</compile_context>

<pallas_src>
import math
import numpy as np
import jax
import jax.numpy as jnp
from jax.experimental import pallas as pl
from jax.experimental.pallas import tpu as pltpu

_LOG_EPS = math.log(1e-5)     # log of the diag clamp: max(exp(x),1e-5) == exp(max(x, ln 1e-5))
_GMM_NORM_CONST = 29.40603    # kept verbatim from the module (== 16*ln(2*pi); assumes D == 16)

_FALLBACK_ERRORS = (TypeError, ValueError, NotImplementedError)
if hasattr(pltpu, "LoweringException"):
    _FALLBACK_ERRORS = _FALLBACK_ERRORS + (pltpu.LoweringException,)


def _round_up(x, m):
    return ((x + m - 1) // m) * m


def _layernorm(x, g, b, eps=1e-5):
    mu = jnp.mean(x, axis=-1, keepdims=True)
    var = jnp.mean((x - mu) ** 2, axis=-1, keepdims=True)
    return (x - mu) * jax.lax.rsqrt(var + eps) * g + b


# ---------------------------------------------------------------------------
# Fused kernel: UncondSimpleMLP trunk + GMM NLL epilogue + masked partial sums.
# TODO(synk): UncondSimpleMLP source is not provided; we assume the standard
#             MAR-style unconditional residual MLP (in-Linear -> depth x
#             [LN, Linear, SiLU, Linear] residual blocks -> LN -> out-Linear).
# ---------------------------------------------------------------------------
def fused_gmm_nll_kernel(z_ref, target_ref, mask_ref,
                         w_in_ref, b_in_ref, ln_g_ref, ln_b_ref,
                         w1_ref, b1_ref, w2_ref, b2_ref,
                         fg_ref, fb_ref,
                         w_head_ref, b_head_ref, sel_ref,
                         out_ref):
    bf16, f32 = jnp.bfloat16, jnp.float32
    depth = w1_ref.shape[0]
    KD, K = sel_ref.shape

    # ---- MLP trunk: bf16 MXU matmuls, f32 LayerNorm / residual / bias ----
    h = jnp.dot(z_ref[...], w_in_ref[...], preferred_element_type=f32) + b_in_ref[...]

    def res_block(d, h):
        x = _layernorm(h, ln_g_ref[d], ln_b_ref[d])
        a = jnp.dot(x.astype(bf16), w1_ref[d], preferred_element_type=f32) + b1_ref[d]
        a = a * jax.nn.sigmoid(a)                                   # SiLU
        a = jnp.dot(a.astype(bf16), w2_ref[d], preferred_element_type=f32) + b2_ref[d]
        return h + a

    # fori_loop bounds vreg live ranges at production depth; fully unrolled when tiny.
    unroll = depth if 0 < depth <= 3 else 1
    h = jax.lax.fori_loop(0, depth, res_block, h, unroll=unroll)

    x = _layernorm(h, fg_ref[...], fb_ref[...])
    xb = x.astype(bf16)

    # ---- fused head projection: [mu | chol-diag | logits | zero-pad] in ONE matmul ----
    head = jnp.dot(xb, w_head_ref[...], preferred_element_type=f32) + b_head_ref[...]
    mu = head[:, :KD]                       # (bn, K*D)
    raw_diag = head[:, KD:2 * KD]           # (bn, K*D)  pre-activation diag of L
    logits = head[:, 2 * KD:2 * KD + K]     # (bn, K)

    # ---- GMM NLL epilogue (f32, slab form, log/divide free) ----
    # torch's einsum('bkdd,bkd->bkd', inv(L), diff) only touches diag(inv(L)) = 1/diag(L);
    # diag(L) = max(exp(raw), 1e-5) = exp(c) with c = max(raw, ln 1e-5), so
    # y = diff * exp(-c) and log_det = 2*sum(c): no exp-overflow, no divide, no log.
    t_rep = jnp.tile(target_ref[...], (1, K))                       # (bn, K*D)
    c = jnp.maximum(raw_diag, _LOG_EPS)
    yk = (t_rep - mu) * jnp.exp(-c)
    sel = sel_ref[...]                                              # (K*D, K) 0/1 block-diag
    quad = jnp.dot(yk * yk, sel, preferred_element_type=f32)        # (bn, K)
    log_det = 2.0 * jnp.dot(c, sel, preferred_element_type=f32)     # (bn, K)
    log_prob = -0.5 * (_GMM_NORM_CONST + log_det + quad)

    # log-softmax over mixture logits (avoids log(softmax) underflow).
    m = jnp.max(logits, axis=-1, keepdims=True)
    log_w = logits - m - jnp.log(jnp.sum(jnp.exp(logits - m), axis=-1, keepdims=True))
    a = log_w + log_prob
    amax = jnp.max(a, axis=-1, keepdims=True)
    log_mix = amax + jnp.log(jnp.sum(jnp.exp(a - amax), axis=-1, keepdims=True))
    nll = -log_mix                                                  # (bn, 1)

    mask = mask_ref[...]                                            # (bn, 1)
    nll_sum = jnp.sum(nll * mask, axis=0, keepdims=True)            # (1, 1)
    msum = jnp.sum(mask, axis=0, keepdims=True)                     # (1, 1)
    out_ref[...] = jnp.concatenate([nll_sum, msum], axis=-1)[None, :, :]   # (1, 1, 2)


def _weight_list(p):
    return [p["w_in"], p["b_in"], p["ln_g"], p["ln_b"],
            p["w1"], p["b1"], p["w2"], p["b2"],
            p["fg"], p["fb"], p["w_head"], p["b_head"], p["sel"]]


def _fused_nll_call(z, target, mask2d, p, block_n, single_buffer_weights, vmem_limit):
    n_pad, d_in = z.shape
    D = target.shape[1]
    num_blocks = n_pad // block_n
    weights = _weight_list(p)

    def row_spec(cols):
        return pl.BlockSpec((block_n, cols), lambda i: (i, 0))

    def const_spec(arr):
        nd = arr.ndim
        idx = lambda i, _n=nd: (0,) * _n
        if single_buffer_weights:
            # Grid-invariant weights: single buffer (halves their VMEM residency;
            # matters most on v7x's 64 MiB VMEM).
            return pl.BlockSpec(arr.shape, idx, pipeline_mode=pl.Buffered(1))
        return pl.BlockSpec(arr.shape, idx)

    out_shape = jax.ShapeDtypeStruct((num_blocks, 1, 2), jnp.float32)   # [nll_sum, mask_sum]
    out_specs = pl.BlockSpec((1, 1, 2), lambda i: (i, 0, 0))

    return pl.pallas_call(
        fused_gmm_nll_kernel,
        out_shape=out_shape,
        grid=(num_blocks,),
        in_specs=[row_spec(d_in), row_spec(D), row_spec(1)]
                 + [const_spec(w) for w in weights],
        out_specs=out_specs,
        compiler_params=pltpu.CompilerParams(
            dimension_semantics=("parallel",),
            vmem_limit_bytes=vmem_limit),
    )(z, target, mask2d, *weights)


def prepare_params(raw, num_gaussians, token_embed_dim):
    """Host-side, one-off repack of the raw UncondSimpleMLP parameters.

    * Output projection is permuted/sliced into ONE contiguous
      [mu | chol-diag | logits] matrix (the off-diagonal Cholesky columns are
      dropped -- the NLL branch never reads them) and zero-padded to a multiple
      of 128 lanes so the fused head matmul is lane-dense on the MXU.
    * A (K*D, K) 0/1 block-diagonal selector is built for the in-kernel
      per-component reduction.
    * Matmul weights are cast to bf16; LN/bias params stay f32.
    """
    K, D = num_gaussians, token_embed_dim
    chol_per_k = D * (D + 1) // 2
    bf16, f32 = jnp.bfloat16, jnp.float32
    w_out, b_out = raw["w_out"], raw["b_out"]
    depth = raw["w1"].shape[0]
    width = raw["w_in"].shape[1]

    mu_cols = np.arange(K * D)
    diag_cols = np.array([K * D + k * chol_per_k + d * (d + 1) // 2 + d
                          for k in range(K) for d in range(D)], dtype=np.int32)
    logit_cols = np.arange(w_out.shape[1] - K, w_out.shape[1])

    w_head = jnp.concatenate(
        [w_out[:, mu_cols], w_out[:, diag_cols], w_out[:, logit_cols]], axis=1)
    b_head = jnp.concatenate([b_out[mu_cols], b_out[diag_cols], b_out[logit_cols]])
    head_cols = 2 * K * D + K
    pad = _round_up(head_cols, 128) - head_cols
    if pad:
        w_head = jnp.pad(w_head, ((0, 0), (0, pad)))
        b_head = jnp.pad(b_head, (0, pad))

    sel = np.zeros((K * D, K), np.float32)
    for k in range(K):
        sel[k * D:(k + 1) * D, k] = 1.0

    return dict(
        w_in=raw["w_in"].astype(bf16),
        b_in=raw["b_in"].reshape(1, width).astype(f32),
        ln_g=raw["ln_g"].reshape(depth, 1, width).astype(f32),
        ln_b=raw["ln_b"].reshape(depth, 1, width).astype(f32),
        w1=raw["w1"].astype(bf16),
        b1=raw["b1"].reshape(depth, 1, width).astype(f32),
        w2=raw["w2"].astype(bf16),
        b2=raw["b2"].reshape(depth, 1, width).astype(f32),
        fg=raw["fg"].reshape(1, width).astype(f32),
        fb=raw["fb"].reshape(1, width).astype(f32),
        w_head=w_head.astype(bf16),
        b_head=b_head.reshape(1, -1).astype(f32),
        sel=jnp.asarray(sel),
    )


def gmm_cov_head_forward(z, target, mask, params, *, num_gaussians,
                         token_embed_dim, block_n=256):
    """NLL branch of GMMCovHead.forward (params = prepare_params(raw, ...))."""
    K, D = num_gaussians, token_embed_dim
    assert params["sel"].shape == (K * D, K)
    n, d_in = z.shape

    z = z.astype(jnp.bfloat16)          # z is only ever consumed as bf16 (halves DMA stream)
    target = target.astype(jnp.float32)
    mask2d = mask.reshape(n, 1).astype(jnp.float32)

    weights = _weight_list(params)
    weight_bytes = sum(int(np.prod(w.shape)) * w.dtype.itemsize for w in weights)

    # Physical VMEM capacity (64 MiB/TC on v7x, 128 MiB on v5e/v6e). The broad
    # except here only guards the hardware probe, never kernel compile errors.
    try:
        vmem_cap = int(pltpu.get_tpu_info().vmem_capacity_bytes)
    except Exception:
        vmem_cap = 64 << 20

    # block_n: grow to 512 on 128 MiB-VMEM parts when weights are resident, but
    # always keep >= 2 grid steps so ("parallel",) can split across v7x's 2 TCs.
    bn = int(block_n)
    if vmem_cap >= (100 << 20) and weight_bytes < (48 << 20):
        bn = max(bn, 512)
    bn = min(bn, _round_up(max(n // 2, 8), 8))
    bn = max(8, _round_up(bn, 8))

    n_pad = _round_up(n, bn)
    if n_pad != n:
        pad = n_pad - n
        z = jnp.pad(z, ((0, pad), (0, 0)))
        target = jnp.pad(target, ((0, pad), (0, 0)))
        mask2d = jnp.pad(mask2d, ((0, pad), (0, 0)))   # padded rows carry mask = 0

    # VMEM budget: resident weights + double-buffered row tiles + live f32
    # activations, clamped to 85% of real chip capacity (valid on v7x's 64 MiB).
    width = params["w_in"].shape[1]
    head_cols = params["w_head"].shape[1]
    act_bytes = 4 * bn * (4 * width + 2 * head_cols + 3 * K * D + 64)
    stream_bytes = 2 * bn * (2 * d_in + 4 * D + 4)
    vmem_est = weight_bytes + 2 * stream_bytes + act_bytes
    vmem_limit = int(min(max(2 * vmem_est, 32 << 20), 0.85 * vmem_cap))
    # TODO(synk): if resident trunk weights alone exceed ~40 MiB (production
    # width/depth on v7x), stream (w1[d], w2[d], ln_*[d]) per step via a second
    # "arbitrary" grid axis / pltpu.emit_pipeline instead of keeping all layers
    # resident; all-resident is correct here and optimal on v5e/v6e (128 MiB).

    use_single_buffer = hasattr(pl, "Buffered")
    if use_single_buffer:
        try:
            partials = jax.block_until_ready(
                _fused_nll_call(z, target, mask2d, params, bn, True, vmem_limit))
        except _FALLBACK_ERRORS:
            # Only for builds rejecting pipeline_mode=pl.Buffered(1); re-budget
            # for double-buffered weights and retry with default specs.
            vmem_limit = int(min(max(2 * (vmem_est + weight_bytes), 32 << 20),
                                 0.85 * vmem_cap))
            partials = jax.block_until_ready(
                _fused_nll_call(z, target, mask2d, params, bn, False, vmem_limit))
    else:
        partials = jax.block_until_ready(
            _fused_nll_call(z, target, mask2d, params, bn, False, vmem_limit))

    # TODO(synk): forward() also adds a flow-matching rec_loss via self.flow_net
    # (never defined in the module's __init__) plus stochastic GMM sampling
    # (torch.distributions / torch.rand_like); that branch is skipped here.
    return jnp.sum(partials[:, 0, 0]) / jnp.sum(partials[:, 0, 1])


# ---------------------------------------------------------------------------
# Deterministic parameter init + pure-JAX reference (mirrors the kernel's
# bf16-matmul / f32-accumulate policy, but builds the full L and uses inv(L)
# exactly like the original PyTorch module).
# ---------------------------------------------------------------------------
def init_params(key, d_in, width, depth, out_size):
    ks = jax.random.split(key, 4)
    s = 0.02
    return dict(
        w_in=s * jax.random.normal(ks[0], (d_in, width), jnp.float32),
        b_in=jnp.zeros((width,), jnp.float32),
        ln_g=jnp.ones((depth, width), jnp.float32),
        ln_b=jnp.zeros((depth, width), jnp.float32),
        w1=s * jax.random.normal(ks[1], (depth, width, width), jnp.float32),
        b1=jnp.zeros((depth, width), jnp.float32),
        w2=s * jax.random.normal(ks[2], (depth, width, width), jnp.float32),
        b2=jnp.zeros((depth, width), jnp.float32),
        fg=jnp.ones((width,), jnp.float32),
        fb=jnp.zeros((width,), jnp.float32),
        w_out=s * jax.random.normal(ks[3], (width, out_size), jnp.float32),
        b_out=jnp.zeros((out_size,), jnp.float32),
    )


def ref_forward(z, target, mask, raw, K, D):
    bf16 = jnp.bfloat16

    def dot(a, w):
        return jnp.dot(a.astype(bf16), w.astype(bf16),
                       preferred_element_type=jnp.float32)

    def ln(x, g, b):
        mu = jnp.mean(x, -1, keepdims=True)
        var = jnp.mean((x - mu) ** 2, -1, keepdims=True)
        return (x - mu) * jax.lax.rsqrt(var + 1e-5) * g + b

    h = dot(z, raw["w_in"]) + raw["b_in"]
    for d in range(raw["w1"].shape[0]):
        x = ln(h, raw["ln_g"][d], raw["ln_b"][d])
        a = dot(x, raw["w1"][d]) + raw["b1"][d]
        a = a * jax.nn.sigmoid(a)
        a = dot(a, raw["w2"][d]) + raw["b2"][d]
        h = h + a
    pred = dot(ln(h, raw["fg"], raw["fb"]), raw["w_out"]) + raw["b_out"]

    n = pred.shape[0]
    chol_per_k = D * (D + 1) // 2
    weight = jax.nn.softmax(pred[:, -K:], axis=-1)
    mu = pred[:, :K * D].reshape(n, K, D)
    chol = pred[:, K * D:K * D + K * chol_per_k].reshape(n, K, chol_per_k)
    tril = np.tril_indices(D)
    L = jnp.zeros((n, K, D, D), jnp.float32).at[..., tril[0], tril[1]].set(chol)
    di = jnp.arange(D)
    L = L.at[..., di, di].set(jnp.maximum(jnp.exp(L[..., di, di]), 1e-5))
    diag_L = L[..., di, di]
    log_det = 2.0 * jnp.sum(jnp.log(diag_L), -1)
    diff = target[:, None, :] - mu
    y = jnp.einsum('bkdd,bkd->bkd', jnp.linalg.inv(L), diff)
    quad = jnp.sum(y ** 2, -1)
    log_prob = -0.5 * (_GMM_NORM_CONST + log_det + quad)
    log_mix = jax.nn.logsumexp(jnp.log(weight) + log_prob, axis=-1)
    nll = -log_mix
    return jnp.sum(nll * mask) / jnp.sum(mask)


if __name__ == "__main__":
    num_gaussians = 4
    token_embed_dim = 8
    decoder_embed_dim = 32
    width = 64
    depth = 2
    N = 40  # batch * seq flattened (deliberately not a block multiple)

    chol_per_k = token_embed_dim * (token_embed_dim + 1) // 2
    out_size = (token_embed_dim * num_gaussians
                + chol_per_k * num_gaussians + num_gaussians)

    key = jax.random.PRNGKey(0)
    kz, kt, kp = jax.random.split(key, 3)
    z = jax.random.normal(kz, (N, decoder_embed_dim), jnp.float32)
    target = jax.random.normal(kt, (N, token_embed_dim), jnp.float32)
    mask = jnp.concatenate([jnp.ones((30,), jnp.float32),
                            jnp.zeros((10,), jnp.float32)])

    raw = init_params(kp, decoder_embed_dim, width, depth, out_size)
    params = prepare_params(raw, num_gaussians, token_embed_dim)

    nll = gmm_cov_head_forward(z, target, mask, params,
                               num_gaussians=num_gaussians,
                               token_embed_dim=token_embed_dim)
    nll = jax.block_until_ready(nll)

    ref = jax.block_until_ready(ref_forward(z, target, mask, raw,
                                            num_gaussians, token_embed_dim))
    assert np.isfinite(float(nll))
    np.testing.assert_allclose(float(nll), float(ref), rtol=2e-3, atol=2e-3)
    print("KERNEL_OK")
</pallas_src>

<mosaic_0001>
module attributes {stable_mosaic.version = 11 : i64} {
  func.func @fused_gmm_nll_kernel(%arg0: i32, %arg1: memref<24x32xbf16, #tpu.memory_space<vmem>>, %arg2: memref<24x8xf32, #tpu.memory_space<vmem>>, %arg3: memref<24x1xf32, #tpu.memory_space<vmem>>, %arg4: memref<32x64xbf16, #tpu.memory_space<vmem>>, %arg5: memref<1x64xf32, #tpu.memory_space<vmem>>, %arg6: memref<2x1x64xf32, #tpu.memory_space<vmem>>, %arg7: memref<2x1x64xf32, #tpu.memory_space<vmem>>, %arg8: memref<2x64x64xbf16, #tpu.memory_space<vmem>>, %arg9: memref<2x1x64xf32, #tpu.memory_space<vmem>>, %arg10: memref<2x64x64xbf16, #tpu.memory_space<vmem>>, %arg11: memref<2x1x64xf32, #tpu.memory_space<vmem>>, %arg12: memref<1x64xf32, #tpu.memory_space<vmem>>, %arg13: memref<1x64xf32, #tpu.memory_space<vmem>>, %arg14: memref<64x128xbf16, #tpu.memory_space<vmem>>, %arg15: memref<1x128xf32, #tpu.memory_space<vmem>>, %arg16: memref<32x4xf32, #tpu.memory_space<vmem>>, %arg17: memref<1x1x2xf32, #tpu.memory_space<vmem>>) attributes {dimension_semantics = [#tpu.dimension_semantics<parallel>], iteration_bounds = array<i64: 2>, scalar_prefetch = 0 : i64, scratch_operands = 0 : i64, tpu.core_type = #tpu.core_type<tc>, window_params = [{transform_indices = @transform_0, window_bounds = array<i64: 24, 32>}, {transform_indices = @transform_1, window_bounds = array<i64: 24, 8>}, {transform_indices = @transform_2, window_bounds = array<i64: 24, 1>}, {pipeline_mode = #tpu.pipeline_mode<synchronous>, transform_indices = @transform_3, window_bounds = array<i64: 32, 64>}, {pipeline_mode = #tpu.pipeline_mode<synchronous>, transform_indices = @transform_4, window_bounds = array<i64: 1, 64>}, {pipeline_mode = #tpu.pipeline_mode<synchronous>, transform_indices = @transform_5, window_bounds = array<i64: 2, 1, 64>}, {pipeline_mode = #tpu.pipeline_mode<synchronous>, transform_indices = @transform_6, window_bounds = array<i64: 2, 1, 64>}, {pipeline_mode = #tpu.pipeline_mode<synchronous>, transform_indices = @transform_7, window_bounds = array<i64: 2, 64, 64>}, {pipeline_mode = #tpu.pipeline_mode<synchronous>, transform_indices = @transform_8, window_bounds = array<i64: 2, 1, 64>}, {pipeline_mode = #tpu.pipeline_mode<synchronous>, transform_indices = @transform_9, window_bounds = array<i64: 2, 64, 64>}, {pipeline_mode = #tpu.pipeline_mode<synchronous>, transform_indices = @transform_10, window_bounds = array<i64: 2, 1, 64>}, {pipeline_mode = #tpu.pipeline_mode<synchronous>, transform_indices = @transform_11, window_bounds = array<i64: 1, 64>}, {pipeline_mode = #tpu.pipeline_mode<synchronous>, transform_indices = @transform_12, window_bounds = array<i64: 1, 64>}, {pipeline_mode = #tpu.pipeline_mode<synchronous>, transform_indices = @transform_13, window_bounds = array<i64: 64, 128>}, {pipeline_mode = #tpu.pipeline_mode<synchronous>, transform_indices = @transform_14, window_bounds = array<i64: 1, 128>}, {pipeline_mode = #tpu.pipeline_mode<synchronous>, transform_indices = @transform_15, window_bounds = array<i64: 32, 4>}, {transform_indices = @transform_16, window_bounds = array<i64: 1, 1, 2>}]} {
    %c0 = arith.constant 0 : index
    %c0_0 = arith.constant 0 : index
    %0 = vector.load %arg1[%c0, %c0_0] : memref<24x32xbf16, #tpu.memory_space<vmem>>, vector<24x32xbf16>
    %c0_1 = arith.constant 0 : index
    %c0_2 = arith.constant 0 : index
    %1 = vector.load %arg4[%c0_1, %c0_2] : memref<32x64xbf16, #tpu.memory_space<vmem>>, vector<32x64xbf16>
    %cst = arith.constant dense<0.000000e+00> : vector<24x64xf32>
    %2 = tpu.matmul %0, %1, %cst {dimension_numbers = #tpu.dot_dimension_numbers<[1], [0], [0], [1], [0, 0, 1, 1], [], []>} : vector<24x32xbf16>, vector<32x64xbf16>, vector<24x64xf32> -> vector<24x64xf32>
    %c0_3 = arith.constant 0 : index
    %c0_4 = arith.constant 0 : index
    %3 = vector.load %arg5[%c0_3, %c0_4] : memref<1x64xf32, #tpu.memory_space<vmem>>, vector<1x64xf32>
    %4 = vector.broadcast %3 : vector<1x64xf32> to vector<24x64xf32>
    %5 = arith.addf %2, %4 : vector<24x64xf32>
    %c0_i32 = arith.constant 0 : i32
    %6 = arith.index_cast %c0_i32 : i32 to index
    %c0_5 = arith.constant 0 : index
    %c0_6 = arith.constant 0 : index
    %7 = vector.load %arg6[%6, %c0_5, %c0_6] : memref<2x1x64xf32, #tpu.memory_space<vmem>>, vector<1x1x64xf32>
    %8 = vector.shape_cast %7 : vector<1x1x64xf32> to vector<1x64xf32>
    %9 = arith.index_cast %c0_i32 : i32 to index
    %c0_7 = arith.constant 0 : index
    %c0_8 = arith.constant 0 : index
    %10 = vector.load %arg7[%9, %c0_7, %c0_8] : memref<2x1x64xf32, #tpu.memory_space<vmem>>, vector<1x1x64xf32>
    %11 = vector.shape_cast %10 : vector<1x1x64xf32> to vector<1x64xf32>
    %cst_9 = arith.constant dense<0.000000e+00> : vector<24xf32>
    %12 = vector.multi_reduction <add>, %5, %cst_9 [1] : vector<24x64xf32> to vector<24xf32>
    %13 = vector.shape_cast %12 : vector<24xf32> to vector<24x1xf32>
    %cst_10 = arith.constant 6.400000e+01 : f32
    %14 = vector.broadcast %cst_10 : f32 to vector<24x1xf32>
    %15 = arith.divf %13, %14 : vector<24x1xf32>
    %16 = vector.broadcast %15 : vector<24x1xf32> to vector<24x64xf32>
    %17 = arith.subf %5, %16 : vector<24x64xf32>
    %18 = arith.mulf %17, %17 : vector<24x64xf32>
    %cst_11 = arith.constant dense<0.000000e+00> : vector<24xf32>
    %19 = vector.multi_reduction <add>, %18, %cst_11 [1] : vector<24x64xf32> to vector<24xf32>
    %20 = vector.shape_cast %19 : vector<24xf32> to vector<24x1xf32>
    %cst_12 = arith.constant 6.400000e+01 : f32
    %21 = vector.broadcast %cst_12 : f32 to vector<24x1xf32>
    %22 = arith.divf %20, %21 : vector<24x1xf32>
    %23 = vector.broadcast %15 : vector<24x1xf32> to vector<24x64xf32>
    %24 = arith.subf %5, %23 : vector<24x64xf32>
    %cst_13 = arith.constant 9.99999974E-6 : f32
    %25 = vector.broadcast %cst_13 : f32 to vector<24x1xf32>
    %26 = arith.addf %22, %25 : vector<24x1xf32>
    %27 = math.rsqrt %26 : vector<24x1xf32>
    %28 = vector.broadcast %27 : vector<24x1xf32> to vector<24x64xf32>
    %29 = arith.mulf %24, %28 : vector<24x64xf32>
    %30 = vector.broadcast %8 : vector<1x64xf32> to vector<24x64xf32>
    %31 = arith.mulf %29, %30 : vector<24x64xf32>
    %32 = vector.broadcast %11 : vector<1x64xf32> to vector<24x64xf32>
    %33 = arith.addf %31, %32 : vector<24x64xf32>
    %34 = arith.truncf %33 : vector<24x64xf32> to vector<24x64xbf16>
    %35 = arith.index_cast %c0_i32 : i32 to index
    %c0_14 = arith.constant 0 : index
    %c0_15 = arith.constant 0 : index
    %36 = vector.load %arg8[%35, %c0_14, %c0_15] : memref<2x64x64xbf16, #tpu.memory_space<vmem>>, vector<1x64x64xbf16>
    %37 = vector.shape_cast %36 : vector<1x64x64xbf16> to vector<64x64xbf16>
    %cst_16 = arith.constant dense<0.000000e+00> : vector<24x64xf32>
    %38 = tpu.matmul %34, %37, %cst_16 {dimension_numbers = #tpu.dot_dimension_numbers<[1], [0], [0], [1], [0, 0, 1, 1], [], []>} : vector<24x64xbf16>, vector<64x64xbf16>, vector<24x64xf32> -> vector<24x64xf32>
    %39 = arith.index_cast %c0_i32 : i32 to index
    %c0_17 = arith.constant 0 : index
    %c0_18 = arith.constant 0 : index
    %40 = vector.load %arg9[%39, %c0_17, %c0_18] : memref<2x1x64xf32, #tpu.memory_space<vmem>>, vector<1x1x64xf32>
    %41 = vector.shape_cast %40 : vector<1x1x64xf32> to vector<1x64xf32>
    %42 = vector.broadcast %41 : vector<1x64xf32> to vector<24x64xf32>
    %43 = arith.addf %38, %42 : vector<24x64xf32>
    %44 = arith.negf %43 : vector<24x64xf32>
    %45 = math.exp %44 : vector<24x64xf32>
    %cst_19 = arith.constant 1.000000e+00 : f32
    %46 = vector.broadcast %cst_19 : f32 to vector<24x64xf32>
    %47 = arith.addf %46, %45 : vector<24x64xf32>
    %48 = arith.divf %46, %47 : vector<24x64xf32>
    %49 = arith.mulf %43, %48 : vector<24x64xf32>
    %50 = arith.truncf %49 : vector<24x64xf32> to vector<24x64xbf16>
    %51 = arith.index_cast %c0_i32 : i32 to index
    %c0_20 = arith.constant 0 : index
    %c0_21 = arith.constant 0 : index
    %52 = vector.load %arg10[%51, %c0_20, %c0_21] : memref<2x64x64xbf16, #tpu.memory_space<vmem>>, vector<1x64x64xbf16>
    %53 = vector.shape_cast %52 : vector<1x64x64xbf16> to vector<64x64xbf16>
    %cst_22 = arith.constant dense<0.000000e+00> : vector<24x64xf32>
    %54 = tpu.matmul %50, %53, %cst_22 {dimension_numbers = #tpu.dot_dimension_numbers<[1], [0], [0], [1], [0, 0, 1, 1], [], []>} : vector<24x64xbf16>, vector<64x64xbf16>, vector<24x64xf32> -> vector<24x64xf32>
    %55 = arith.index_cast %c0_i32 : i32 to index
    %c0_23 = arith.constant 0 : index
    %c0_24 = arith.constant 0 : index
    %56 = vector.load %arg11[%55, %c0_23, %c0_24] : memref<2x1x64xf32, #tpu.memory_space<vmem>>, vector<1x1x64xf32>
    %57 = vector.shape_cast %56 : vector<1x1x64xf32> to vector<1x64xf32>
    %58 = vector.broadcast %57 : vector<1x64xf32> to vector<24x64xf32>
    %59 = arith.addf %54, %58 : vector<24x64xf32>
    %60 = arith.addf %5, %59 : vector<24x64xf32>
    %c1_i32 = arith.constant 1 : i32
    %61 = arith.index_cast %c1_i32 : i32 to index
    %c0_25 = arith.constant 0 : index
    %c0_26 = arith.constant 0 : index
    %62 = vector.load %arg6[%61, %c0_25, %c0_26] : memref<2x1x64xf32, #tpu.memory_space<vmem>>, vector<1x1x64xf32>
    %63 = vector.shape_cast %62 : vector<1x1x64xf32> to vector<1x64xf32>
    %64 = arith.index_cast %c1_i32 : i32 to index
    %c0_27 = arith.constant 0 : index
    %c0_28 = arith.constant 0 : index
    %65 = vector.load %arg7[%64, %c0_27, %c0_28] : memref<2x1x64xf32, #tpu.memory_space<vmem>>, vector<1x1x64xf32>
    %66 = vector.shape_cast %65 : vector<1x1x64xf32> to vector<1x64xf32>
    %cst_29 = arith.constant dense<0.000000e+00> : vector<24xf32>
    %67 = vector.multi_reduction <add>, %60, %cst_29 [1] : vector<24x64xf32> to vector<24xf32>
    %68 = vector.shape_cast %67 : vector<24xf32> to vector<24x1xf32>
    %cst_30 = arith.constant 6.400000e+01 : f32
    %69 = vector.broadcast %cst_30 : f32 to vector<24x1xf32>
    %70 = arith.divf %68, %69 : vector<24x1xf32>
    %71 = vector.broadcast %70 : vector<24x1xf32> to vector<24x64xf32>
    %72 = arith.subf %60, %71 : vector<24x64xf32>
    %73 = arith.mulf %72, %72 : vector<24x64xf32>
    %cst_31 = arith.constant dense<0.000000e+00> : vector<24xf32>
    %74 = vector.multi_reduction <add>, %73, %cst_31 [1] : vector<24x64xf32> to vector<24xf32>
    %75 = vector.shape_cast %74 : vector<24xf32> to vector<24x1xf32>
    %cst_32 = arith.constant 6.400000e+01 : f32
    %76 = vector.broadcast %cst_32 : f32 to vector<24x1xf32>
    %77 = arith.divf %75, %76 : vector<24x1xf32>
    %78 = vector.broadcast %70 : vector<24x1xf32> to vector<24x64xf32>
    %79 = arith.subf %60, %78 : vector<24x64xf32>
    %cst_33 = arith.constant 9.99999974E-6 : f32
    %80 = vector.broadcast %cst_33 : f32 to vector<24x1xf32>
    %81 = arith.addf %77, %80 : vector<24x1xf32>
    %82 = math.rsqrt %81 : vector<24x1xf32>
    %83 = vector.broadcast %82 : vector<24x1xf32> to vector<24x64xf32>
    %84 = arith.mulf %79, %83 : vector<24x64xf32>
    %85 = vector.broadcast %63 : vector<1x64xf32> to vector<24x64xf32>
    %86 = arith.mulf %84, %85 : vector<24x64xf32>
    %87 = vector.broadcast %66 : vector<1x64xf32> to vector<24x64xf32>
    %88 = arith.addf %86, %87 : vector<24x64xf32>
    %89 = arith.truncf %88 : vector<24x64xf32> to vector<24x64xbf16>
    %90 = arith.index_cast %c1_i32 : i32 to index
    %c0_34 = arith.constant 0 : index
    %c0_35 = arith.constant 0 : index
    %91 = vector.load %arg8[%90, %c0_34, %c0_35] : memref<2x64x64xbf16, #tpu.memory_space<vmem>>, vector<1x64x64xbf16>
    %92 = vector.shape_cast %91 : vector<1x64x64xbf16> to vector<64x64xbf16>
    %cst_36 = arith.constant dense<0.000000e+00> : vector<24x64xf32>
    %93 = tpu.matmul %89, %92, %cst_36 {dimension_numbers = #tpu.dot_dimension_numbers<[1], [0], [0], [1], [0, 0, 1, 1], [], []>} : vector<24x64xbf16>, vector<64x64xbf16>, vector<24x64xf32> -> vector<24x64xf32>
    %94 = arith.index_cast %c1_i32 : i32 to index
    %c0_37 = arith.constant 0 : index
    %c0_38 = arith.constant 0 : index
    %95 = vector.load %arg9[%94, %c0_37, %c0_38] : memref<2x1x64xf32, #tpu.memory_space<vmem>>, vector<1x1x64xf32>
    %96 = vector.shape_cast %95 : vector<1x1x64xf32> to vector<1x64xf32>
    %97 = vector.broadcast %96 : vector<1x64xf32> to vector<24x64xf32>
    %98 = arith.addf %93, %97 : vector<24x64xf32>
    %99 = arith.negf %98 : vector<24x64xf32>
    %100 = math.exp %99 : vector<24x64xf32>
    %cst_39 = arith.constant 1.000000e+00 : f32
    %101 = vector.broadcast %cst_39 : f32 to vector<24x64xf32>
    %102 = arith.addf %101, %100 : vector<24x64xf32>
    %103 = arith.divf %101, %102 : vector<24x64xf32>
    %104 = arith.mulf %98, %103 : vector<24x64xf32>
    %105 = arith.truncf %104 : vector<24x64xf32> to vector<24x64xbf16>
    %106 = arith.index_cast %c1_i32 : i32 to index
    %c0_40 = arith.constant 0 : index
    %c0_41 = arith.constant 0 : index
    %107 = vector.load %arg10[%106, %c0_40, %c0_41] : memref<2x64x64xbf16, #tpu.memory_space<vmem>>, vector<1x64x64xbf16>
    %108 = vector.shape_cast %107 : vector<1x64x64xbf16> to vector<64x64xbf16>
    %cst_42 = arith.constant dense<0.000000e+00> : vector<24x64xf32>
    %109 = tpu.matmul %105, %108, %cst_42 {dimension_numbers = #tpu.dot_dimension_numbers<[1], [0], [0], [1], [0, 0, 1, 1], [], []>} : vector<24x64xbf16>, vector<64x64xbf16>, vector<24x64xf32> -> vector<24x64xf32>
    %110 = arith.index_cast %c1_i32 : i32 to index
    %c0_43 = arith.constant 0 : index
    %c0_44 = arith.constant 0 : index
    %111 = vector.load %arg11[%110, %c0_43, %c0_44] : memref<2x1x64xf32, #tpu.memory_space<vmem>>, vector<1x1x64xf32>
    %112 = vector.shape_cast %111 : vector<1x1x64xf32> to vector<1x64xf32>
    %113 = vector.broadcast %112 : vector<1x64xf32> to vector<24x64xf32>
    %114 = arith.addf %109, %113 : vector<24x64xf32>
    %115 = arith.addf %60, %114 : vector<24x64xf32>
    %c2_i32 = arith.constant 2 : i32
    %c0_45 = arith.constant 0 : index
    %c0_46 = arith.constant 0 : index
    %116 = vector.load %arg12[%c0_45, %c0_46] : memref<1x64xf32, #tpu.memory_space<vmem>>, vector<1x64xf32>
    %c0_47 = arith.constant 0 : index
    %c0_48 = arith.constant 0 : index
    %117 = vector.load %arg13[%c0_47, %c0_48] : memref<1x64xf32, #tpu.memory_space<vmem>>, vector<1x64xf32>
    %cst_49 = arith.constant dense<0.000000e+00> : vector<24xf32>
    %118 = vector.multi_reduction <add>, %115, %cst_49 [1] : vector<24x64xf32> to vector<24xf32>
    %119 = vector.shape_cast %118 : vector<24xf32> to vector<24x1xf32>
    %cst_50 = arith.constant 6.400000e+01 : f32
    %120 = vector.broadcast %cst_50 : f32 to vector<24x1xf32>
    %121 = arith.divf %119, %120 : vector<24x1xf32>
    %122 = vector.broadcast %121 : vector<24x1xf32> to vector<24x64xf32>
    %123 = arith.subf %115, %122 : vector<24x64xf32>
    %124 = arith.mulf %123, %123 : vector<24x64xf32>
    %cst_51 = arith.constant dense<0.000000e+00> : vector<24xf32>
    %125 = vector.multi_reduction <add>, %124, %cst_51 [1] : vector<24x64xf32> to vector<24xf32>
    %126 = vector.shape_cast %125 : vector<24xf32> to vector<24x1xf32>
    %cst_52 = arith.constant 6.400000e+01 : f32
    %127 = vector.broadcast %cst_52 : f32 to vector<24x1xf32>
    %128 = arith.divf %126, %127 : vector<24x1xf32>
    %129 = vector.broadcast %121 : vector<24x1xf32> to vector<24x64xf32>
    %130 = arith.subf %115, %129 : vector<24x64xf32>
    %cst_53 = arith.constant 9.99999974E-6 : f32
    %131 = vector.broadcast %cst_53 : f32 to vector<24x1xf32>
    %132 = arith.addf %128, %131 : vector<24x1xf32>
    %133 = math.rsqrt %132 : vector<24x1xf32>
    %134 = vector.broadcast %133 : vector<24x1xf32> to vector<24x64xf32>
    %135 = arith.mulf %130, %134 : vector<24x64xf32>
    %136 = vector.broadcast %116 : vector<1x64xf32> to vector<24x64xf32>
    %137 = arith.mulf %135, %136 : vector<24x64xf32>
    %138 = vector.broadcast %117 : vector<1x64xf32> to vector<24x64xf32>
    %139 = arith.addf %137, %138 : vector<24x64xf32>
    %140 = arith.truncf %139 : vector<24x64xf32> to vector<24x64xbf16>
    %c0_54 = arith.constant 0 : index
    %c0_55 = arith.constant 0 : index
    %141 = vector.load %arg14[%c0_54, %c0_55] : memref<64x128xbf16, #tpu.memory_space<vmem>>, vector<64x128xbf16>
    %cst_56 = arith.constant dense<0.000000e+00> : vector<24x128xf32>
    %142 = tpu.matmul %140, %141, %cst_56 {dimension_numbers = #tpu.dot_dimension_numbers<[1], [0], [0], [1], [0, 0, 1, 1], [], []>} : vector<24x64xbf16>, vector<64x128xbf16>, vector<24x128xf32> -> vector<24x128xf32>
    %c0_57 = arith.constant 0 : index
    %c0_58 = arith.constant 0 : index
    %143 = vector.load %arg15[%c0_57, %c0_58] : memref<1x128xf32, #tpu.memory_space<vmem>>, vector<1x128xf32>
    %144 = vector.broadcast %143 : vector<1x128xf32> to vector<24x128xf32>
    %145 = arith.addf %142, %144 : vector<24x128xf32>
    %146 = vector.extract_strided_slice %145 {offsets = [0, 0], sizes = [24, 32], strides = [1, 1]} : vector<24x128xf32> to vector<24x32xf32>
    %147 = vector.extract_strided_slice %145 {offsets = [0, 32], sizes = [24, 32], strides = [1, 1]} : vector<24x128xf32> to vector<24x32xf32>
    %148 = vector.extract_strided_slice %145 {offsets = [0, 64], sizes = [24, 4], strides = [1, 1]} : vector<24x128xf32> to vector<24x4xf32>
    %c0_59 = arith.constant 0 : index
    %c0_60 = arith.constant 0 : index
    %149 = vector.load %arg2[%c0_59, %c0_60] : memref<24x8xf32, #tpu.memory_space<vmem>>, vector<24x8xf32>
    %150 = tpu.concatenate %149, %149, %149, %149 in 1 : vector<24x8xf32>, vector<24x8xf32>, vector<24x8xf32>, vector<24x8xf32> -> vector<24x32xf32>
    %cst_61 = arith.constant -11.5129251 : f32
    %151 = vector.broadcast %cst_61 : f32 to vector<24x32xf32>
    %152 = arith.maximumf %147, %151 : vector<24x32xf32>
    %153 = arith.subf %150, %146 : vector<24x32xf32>
    %cst_62 = arith.constant 0.000000e+00 : f32
    %154 = vector.broadcast %cst_62 : f32 to vector<24x32xf32>
    %155 = arith.subf %154, %152 : vector<24x32xf32>
    %156 = math.exp %155 : vector<24x32xf32>
    %157 = arith.mulf %153, %156 : vector<24x32xf32>
    %c0_63 = arith.constant 0 : index
    %c0_64 = arith.constant 0 : index
    %158 = vector.load %arg16[%c0_63, %c0_64] : memref<32x4xf32, #tpu.memory_space<vmem>>, vector<32x4xf32>
    %159 = arith.mulf %157, %157 : vector<24x32xf32>
    %cst_65 = arith.constant dense<0.000000e+00> : vector<24x4xf32>
    %160 = tpu.matmul %159, %158, %cst_65 {dimension_numbers = #tpu.dot_dimension_numbers<[1], [0], [0], [1], [0, 0, 1, 1], [], []>} : vector<24x32xf32>, vector<32x4xf32>, vector<24x4xf32> -> vector<24x4xf32>
    %cst_66 = arith.constant dense<0.000000e+00> : vector<24x4xf32>
    %161 = tpu.matmul %152, %158, %cst_66 {dimension_numbers = #tpu.dot_dimension_numbers<[1], [0], [0], [1], [0, 0, 1, 1], [], []>} : vector<24x32xf32>, vector<32x4xf32>, vector<24x4xf32> -> vector<24x4xf32>
    %cst_67 = arith.constant 2.000000e+00 : f32
    %162 = vector.broadcast %cst_67 : f32 to vector<24x4xf32>
    %163 = arith.mulf %162, %161 : vector<24x4xf32>
    %cst_68 = arith.constant 29.4060307 : f32
    %164 = vector.broadcast %cst_68 : f32 to vector<24x4xf32>
    %165 = arith.addf %164, %163 : vector<24x4xf32>
    %166 = arith.addf %165, %160 : vector<24x4xf32>
    %cst_69 = arith.constant -5.000000e-01 : f32
    %167 = vector.broadcast %cst_69 : f32 to vector<24x4xf32>
    %168 = arith.mulf %167, %166 : vector<24x4xf32>
    %cst_70 = arith.constant dense<0xFF800000> : vector<24xf32>
    %169 = vector.multi_reduction <maximumf>, %148, %cst_70 [1] : vector<24x4xf32> to vector<24xf32>
    %170 = vector.shape_cast %169 : vector<24xf32> to vector<24x1xf32>
    %171 = vector.broadcast %170 : vector<24x1xf32> to vector<24x4xf32>
    %172 = arith.subf %148, %171 : vector<24x4xf32>
    %173 = vector.broadcast %170 : vector<24x1xf32> to vector<24x4xf32>
    %174 = arith.subf %148, %173 : vector<24x4xf32>
    %175 = math.exp %174 : vector<24x4xf32>
    %cst_71 = arith.constant dense<0.000000e+00> : vector<24xf32>
    %176 = vector.multi_reduction <add>, %175, %cst_71 [1] : vector<24x4xf32> to vector<24xf32>
    %177 = vector.shape_cast %176 : vector<24xf32> to vector<24x1xf32>
    %178 = math.log %177 : vector<24x1xf32>
    %179 = vector.broadcast %178 : vector<24x1xf32> to vector<24x4xf32>
    %180 = arith.subf %172, %179 : vector<24x4xf32>
    %181 = arith.addf %180, %168 : vector<24x4xf32>
    %cst_72 = arith.constant dense<0xFF800000> : vector<24xf32>
    %182 = vector.multi_reduction <maximumf>, %181, %cst_72 [1] : vector<24x4xf32> to vector<24xf32>
    %183 = vector.shape_cast %182 : vector<24xf32> to vector<24x1xf32>
    %184 = vector.broadcast %183 : vector<24x1xf32> to vector<24x4xf32>
    %185 = arith.subf %181, %184 : vector<24x4xf32>
    %186 = math.exp %185 : vector<24x4xf32>
    %cst_73 = arith.constant dense<0.000000e+00> : vector<24xf32>
    %187 = vector.multi_reduction <add>, %186, %cst_73 [1] : vector<24x4xf32> to vector<24xf32>
    %188 = vector.shape_cast %187 : vector<24xf32> to vector<24x1xf32>
    %189 = math.log %188 : vector<24x1xf32>
    %190 = arith.addf %183, %189 : vector<24x1xf32>
    %cst_74 = arith.constant 0.000000e+00 : f32
    %191 = vector.broadcast %cst_74 : f32 to vector<24x1xf32>
    %192 = arith.subf %191, %190 : vector<24x1xf32>
    %c0_75 = arith.constant 0 : index
    %c0_76 = arith.constant 0 : index
    %193 = vector.load %arg3[%c0_75, %c0_76] : memref<24x1xf32, #tpu.memory_space<vmem>>, vector<24x1xf32>
    %194 = arith.mulf %192, %193 : vector<24x1xf32>
    %cst_77 = arith.constant dense<0.000000e+00> : vector<1xf32>
    %195 = vector.multi_reduction <add>, %194, %cst_77 [0] : vector<24x1xf32> to vector<1xf32>
    %196 = vector.shape_cast %195 : vector<1xf32> to vector<1x1xf32>
    %cst_78 = arith.constant dense<0.000000e+00> : vector<1xf32>
    %197 = vector.multi_reduction <add>, %193, %cst_78 [0] : vector<24x1xf32> to vector<1xf32>
    %198 = vector.shape_cast %197 : vector<1xf32> to vector<1x1xf32>
    %199 = tpu.concatenate %196, %198 in 1 : vector<1x1xf32>, vector<1x1xf32> -> vector<1x2xf32>
    %200 = vector.shape_cast %199 : vector<1x2xf32> to vector<1x1x2xf32>
    %c0_79 = arith.constant 0 : index
    %c0_80 = arith.constant 0 : index
    %c0_81 = arith.constant 0 : index
    %201 = vector.load %arg17[%c0_79, %c0_80, %c0_81] : memref<1x1x2xf32, #tpu.memory_space<vmem>>, vector<1x1x2xf32>
    tpu.vector_store %arg17[%c0_79, %c0_80, %c0_81], %200 {strides = array<i32>} : memref<1x1x2xf32, #tpu.memory_space<vmem>>, vector<1x1x2xf32>,
    return
  }
  func.func @transform_0(%arg0: i32) -> (i32, i32) {
    %c0_i32 = arith.constant 0 : i32
    %c0_i32_0 = arith.constant 0 : i32
    return %arg0, %c0_i32 : i32, i32
  }
  func.func @transform_1(%arg0: i32) -> (i32, i32) {
    %c0_i32 = arith.constant 0 : i32
    %c0_i32_0 = arith.constant 0 : i32
    return %arg0, %c0_i32 : i32, i32
  }
  func.func @transform_2(%arg0: i32) -> (i32, i32) {
    %c0_i32 = arith.constant 0 : i32
    %c0_i32_0 = arith.constant 0 : i32
    return %arg0, %c0_i32 : i32, i32
  }
  func.func @transform_3(%arg0: i32) -> (i32, i32) {
    %c0_i32 = arith.constant 0 : i32
    %c0_i32_0 = arith.constant 0 : i32
    %c0_i32_1 = arith.constant 0 : i32
    return %c0_i32, %c0_i32_0 : i32, i32
  }
  func.func @transform_4(%arg0: i32) -> (i32, i32) {
    %c0_i32 = arith.constant 0 : i32
    %c0_i32_0 = arith.constant 0 : i32
    %c0_i32_1 = arith.constant 0 : i32
    return %c0_i32, %c0_i32_0 : i32, i32
  }
  func.func @transform_5(%arg0: i32) -> (i32, i32, i32) {
    %c0_i32 = arith.constant 0 : i32
    %c0_i32_0 = arith.constant 0 : i32
    %c0_i32_1 = arith.constant 0 : i32
    %c0_i32_2 = arith.constant 0 : i32
    return %c0_i32, %c0_i32_0, %c0_i32_1 : i32, i32, i32
  }
  func.func @transform_6(%arg0: i32) -> (i32, i32, i32) {
    %c0_i32 = arith.constant 0 : i32
    %c0_i32_0 = arith.constant 0 : i32
    %c0_i32_1 = arith.constant 0 : i32
    %c0_i32_2 = arith.constant 0 : i32
    return %c0_i32, %c0_i32_0, %c0_i32_1 : i32, i32, i32
  }
  func.func @transform_7(%arg0: i32) -> (i32, i32, i32) {
    %c0_i32 = arith.constant 0 : i32
    %c0_i32_0 = arith.constant 0 : i32
    %c0_i32_1 = arith.constant 0 : i32
    %c0_i32_2 = arith.constant 0 : i32
    return %c0_i32, %c0_i32_0, %c0_i32_1 : i32, i32, i32
  }
  func.func @transform_8(%arg0: i32) -> (i32, i32, i32) {
    %c0_i32 = arith.constant 0 : i32
    %c0_i32_0 = arith.constant 0 : i32
    %c0_i32_1 = arith.constant 0 : i32
    %c0_i32_2 = arith.constant 0 : i32
    return %c0_i32, %c0_i32_0, %c0_i32_1 : i32, i32, i32
  }
  func.func @transform_9(%arg0: i32) -> (i32, i32, i32) {
    %c0_i32 = arith.constant 0 : i32
    %c0_i32_0 = arith.constant 0 : i32
    %c0_i32_1 = arith.constant 0 : i32
    %c0_i32_2 = arith.constant 0 : i32
    return %c0_i32, %c0_i32_0, %c0_i32_1 : i32, i32, i32
  }
  func.func @transform_10(%arg0: i32) -> (i32, i32, i32) {
    %c0_i32 = arith.constant 0 : i32
    %c0_i32_0 = arith.constant 0 : i32
    %c0_i32_1 = arith.constant 0 : i32
    %c0_i32_2 = arith.constant 0 : i32
    return %c0_i32, %c0_i32_0, %c0_i32_1 : i32, i32, i32
  }
  func.func @transform_11(%arg0: i32) -> (i32, i32) {
    %c0_i32 = arith.constant 0 : i32
    %c0_i32_0 = arith.constant 0 : i32
    %c0_i32_1 = arith.constant 0 : i32
    return %c0_i32, %c0_i32_0 : i32, i32
  }
  func.func @transform_12(%arg0: i32) -> (i32, i32) {
    %c0_i32 = arith.constant 0 : i32
    %c0_i32_0 = arith.constant 0 : i32
    %c0_i32_1 = arith.constant 0 : i32
    return %c0_i32, %c0_i32_0 : i32, i32
  }
  func.func @transform_13(%arg0: i32) -> (i32, i32) {
    %c0_i32 = arith.constant 0 : i32
    %c0_i32_0 = arith.constant 0 : i32
    %c0_i32_1 = arith.constant 0 : i32
    return %c0_i32, %c0_i32_0 : i32, i32
  }
  func.func @transform_14(%arg0: i32) -> (i32, i32) {
    %c0_i32 = arith.constant 0 : i32
    %c0_i32_0 = arith.constant 0 : i32
    %c0_i32_1 = arith.constant 0 : i32
    return %c0_i32, %c0_i32_0 : i32, i32
  }
  func.func @transform_15(%arg0: i32) -> (i32, i32) {
    %c0_i32 = arith.constant 0 : i32
    %c0_i32_0 = arith.constant 0 : i32
    %c0_i32_1 = arith.constant 0 : i32
    return %c0_i32, %c0_i32_0 : i32, i32
  }
  func.func @transform_16(%arg0: i32) -> (i32, i32, i32) {
    %c0_i32 = arith.constant 0 : i32
    %c0_i32_0 = arith.constant 0 : i32
    %c0_i32_1 = arith.constant 0 : i32
    return %arg0, %c0_i32, %c0_i32_0 : i32, i32, i32
  }
}

</mosaic_0001>

<llo_original>
// kernel: tpu_custom_call.1
$region0: #{tpu_custom_call.1}
  #allocation0 [shape = 'u32[]', space=smem, size = 0x4, offset = 0x4, fixed_abs, tag = 'smem constant byte address 0x4 - core index']
  #allocation1 [shape = 'u32[144,128]{1,0:T(1,128)}', space=vmem, size = 0x12000, scoped, tag = 'internal scratch']
  %s0 = inlined_call_operand.vmem [shape: bf16[48,32], index: 0, kind: input, shape index: {}]
  %s1 = inlined_call_operand.vmem [shape: f32[48,8], index: 1, kind: input, shape index: {}]
  %s2 = inlined_call_operand.vmem [shape: f32[48,1], index: 2, kind: input, shape index: {}]
  %s3 = inlined_call_operand.vmem [shape: bf16[32,64], index: 3, kind: input, shape index: {}]
  %s4 = inlined_call_operand.hbm [shape: f32[1,64], index: 4, kind: input, shape index: {}]
  %s5 = inlined_call_operand.vmem [shape: f32[2,1,64], index: 5, kind: input, shape index: {}]
  %s6 = inlined_call_operand.vmem [shape: f32[2,1,64], index: 6, kind: input, shape index: {}]
  %s7 = inlined_call_operand.vmem [shape: bf16[2,64,64], index: 7, kind: input, shape index: {}]
  %s8 = inlined_call_operand.vmem [shape: f32[2,1,64], index: 8, kind: input, shape index: {}]
  %s9 = inlined_call_operand.vmem [shape: bf16[2,64,64], index: 9, kind: input, shape index: {}]
  %s10 = inlined_call_operand.vmem [shape: f32[2,1,64], index: 10, kind: input, shape index: {}]
  %s11 = inlined_call_operand.vmem [shape: f32[1,64], index: 11, kind: input, shape index: {}]
  %s12 = inlined_call_operand.vmem [shape: f32[1,64], index: 12, kind: input, shape index: {}]
  %s13 = inlined_call_operand.vmem [shape: bf16[64,128], index: 13, kind: input, shape index: {}]
  %s14 = inlined_call_operand.vmem [shape: f32[1,128], index: 14, kind: input, shape index: {}]
  %s15 = inlined_call_operand.vmem [shape: f32[32,4], index: 15, kind: input, shape index: {}]
  %s16 = inlined_call_operand.hbm [shape: f32[2,1,2], index: 16, kind: output, shape index: {}]
  %s17 = sld [smem:[#allocation0]]
  $region101: #{tpu_custom_call.1} parent=0
    _
  %s19 = ssub.s32 1, %s17
  %s20 = scalar_select 0, %s19, %s17
  $region1: #{tpu_custom_call.1} parent=0
    #allocation2 [shape = 'u8[512]{0}', space=vmem, size = 0x400, scoped, tag = 'input window, operand 4, single buffered']
    #allocation3 [shape = 's32[2]{0}', space=sflag, size = 0x8, scoped, tag = 'scoped memory for tpu_custom_call.1']
    #allocation4 [shape = 's32[2]{0}', space=sflag, size = 0x8, scoped, tag = 'scoped memory for tpu_custom_call.1']
    #allocation5 [shape = 'u8[1024]{0}', space=vmem, size = 0x400, scoped, tag = 'output window, operand 0']
    %21 = vsyncpa [#allocation3], 0
    %22 = vsyncpa [#allocation4], 0
    %s23 = scalar_lea.sflag [#allocation4], 1
    %24 = vsyncpa %s23, 0
    loop: start=0, step=1, limit=4
    $region2: #{tpu_custom_call.1} parent=1 // loop_pre_header
      _
    $region3: #{tpu_custom_call.1} parent=1 // loop_header
      %s26 = sphi 0, %s30
      %p27 = scmp.ge.s32.totalorder %s26, 4
      %s36 = sphi 0, %s38
      %s39 = sphi 0, %s36
      %s40 = sphi 0, %s39
      %s56 = sphi 0, %s40
      %s62 = sphi 0, %s64
      %s65 = sphi 0, %s62
      %s66 = sphi 0, %s65
      %s82 = sphi 0, %s66
      %s88 = sphi 0, %s90
      %s91 = sphi 0, %s88
      %s92 = sphi 0, %s91
      %s108 = sphi 0, %s92
      %s112 = sphi 0, %s112
      %s114 = sphi 0, %s112
      %s115 = sphi 0, %s114
      %s129 = sphi 0, %s115
      %s133 = sphi 0, %s133
      %s135 = sphi 0, %s133
      %s136 = sphi 0, %s135
      %s150 = sphi 0, %s136
      %s154 = sphi 0, %s154
      %s156 = sphi 0, %s154
      %s157 = sphi 0, %s156
      %s171 = sphi 0, %s157
      %s175 = sphi 0, %s175
      %s177 = sphi 0, %s175
      %s178 = sphi 0, %s177
      %s192 = sphi 0, %s178
      %s196 = sphi 0, %s196
      %s198 = sphi 0, %s196
      %s199 = sphi 0, %s198
      %s213 = sphi 0, %s199
      %s217 = sphi 0, %s217
      %s219 = sphi 0, %s217
      %s220 = sphi 0, %s219
      %s234 = sphi 0, %s220
      %s238 = sphi 0, %s238
      %s240 = sphi 0, %s238
      %s241 = sphi 0, %s240
      %s255 = sphi 0, %s241
      %s259 = sphi 0, %s259
      %s261 = sphi 0, %s259
      %s262 = sphi 0, %s261
      %s276 = sphi 0, %s262
      %s280 = sphi 0, %s280
      %s282 = sphi 0, %s280
      %s283 = sphi 0, %s282
      %s297 = sphi 0, %s283
      %s301 = sphi 0, %s301
      %s303 = sphi 0, %s301
      %s304 = sphi 0, %s303
      %s318 = sphi 0, %s304
      %s322 = sphi 0, %s322
      %s324 = sphi 0, %s322
      %s325 = sphi 0, %s324
      %s339 = sphi 0, %s325
      %s343 = sphi 0, %s343
      %s345 = sphi 0, %s343
      %s346 = sphi 0, %s345
      %s360 = sphi 0, %s346
      %s364 = sphi 0, %s364
      %s366 = sphi 0, %s364
      %s367 = sphi 0, %s366
      %s381 = sphi 0, %s367
      %s387 = sphi 0, %s389
      %s390 = sphi 0, %s387
      %s391 = sphi 0, %s390
      %s407 = sphi 0, %s391
    $region4: #{tpu_custom_call.1} parent=1 // loop_header_branch
      %29 = sbr.rel (%p27) target = $region8
    $region5: #{tpu_custom_call.1} parent=1 // loop_body
      %s31 = ssub.s32 %s26, 1
      %s32 = ssub.s32 %s26, 2
      %s33 = sadd.s32 %s26, 1
      %s34 = ssub.s32 %s26, %s33
      %p35 = scmp.eq.s32.totalorder %s34, 0
      %s37 = sadd.s32 %s36, 1
      %s38 = scalar_select %p35, %s36, %s37
      %p41 = pneg %p35
      %p42 = scmp.eq.s32.totalorder %s26, 1
      %p43 = por %p41, %p42
      %p44 = scmp.ne.s32.totalorder %s36, %s39
      %p45 = scmp.eq.s32.totalorder %s26, 0
      %p46 = por %p44, %p45
      %p47 = scmp.ne.s32.totalorder %s36, %s39
      %p48 = scmp.eq.s32.totalorder %s31, 1
      %p49 = por %p47, %p48
      %p50 = scmp.ne.s32.totalorder %s39, %s40
      %p51 = scmp.eq.s32.totalorder %s31, 0
      %p52 = por %p50, %p51
      %p53 = scmp.ne.s32.totalorder %s39, %s40
      %p54 = scmp.eq.s32.totalorder %s32, 1
      %p55 = por %p53, %p54
      %p57 = scmp.ne.s32.totalorder %s40, %s56
      %p58 = scmp.eq.s32.totalorder %s32, 0
      %p59 = por %p57, %p58
      %s60 = ssub.s32 %s26, %s33
      %p61 = scmp.eq.s32.totalorder %s60, 0
      %s63 = sadd.s32 %s62, 1
      %s64 = scalar_select %p61, %s62, %s63
      %p67 = pneg %p61
      %p68 = scmp.eq.s32.totalorder %s26, 1
      %p69 = por %p67, %p68
      %p70 = scmp.ne.s32.totalorder %s62, %s65
      %p71 = scmp.eq.s32.totalorder %s26, 0
      %p72 = por %p70, %p71
      %p73 = scmp.ne.s32.totalorder %s62, %s65
      %p74 = scmp.eq.s32.totalorder %s31, 1
      %p75 = por %p73, %p74
      %p76 = scmp.ne.s32.totalorder %s65, %s66
      %p77 = scmp.eq.s32.totalorder %s31, 0
      %p78 = por %p76, %p77
      %p79 = scmp.ne.s32.totalorder %s65, %s66
      %p80 = scmp.eq.s32.totalorder %s32, 1
      %p81 = por %p79, %p80
      %p83 = scmp.ne.s32.totalorder %s66, %s82
      %p84 = scmp.eq.s32.totalorder %s32, 0
      %p85 = por %p83, %p84
      %s86 = ssub.s32 %s26, %s33
      %p87 = scmp.eq.s32.totalorder %s86, 0
      %s89 = sadd.s32 %s88, 1
      %s90 = scalar_select %p87, %s88, %s89
      %p93 = pneg %p87
      %p94 = scmp.eq.s32.totalorder %s26, 1
      %p95 = por %p93, %p94
      %p96 = scmp.ne.s32.totalorder %s88, %s91
      %p97 = scmp.eq.s32.totalorder %s26, 0
      %p98 = por %p96, %p97
      %p99 = scmp.ne.s32.totalorder %s88, %s91
      %p100 = scmp.eq.s32.totalorder %s31, 1
      %p101 = por %p99, %p100
      %p102 = scmp.ne.s32.totalorder %s91, %s92
      %p103 = scmp.eq.s32.totalorder %s31, 0
      %p104 = por %p102, %p103
      %p105 = scmp.ne.s32.totalorder %s91, %s92
      %p106 = scmp.eq.s32.totalorder %s32, 1
      %p107 = por %p105, %p106
      %p109 = scmp.ne.s32.totalorder %s92, %s108
      %p110 = scmp.eq.s32.totalorder %s32, 0
      %p111 = por %p109, %p110
      %s113 = sadd.s32 %s112, 1
      %p116 = scmp.eq.s32.totalorder %s26, 1
      %p117 = scmp.ne.s32.totalorder %s112, %s114
      %p118 = scmp.eq.s32.totalorder %s26, 0
      %p119 = por %p117, %p118
      %p120 = scmp.ne.s32.totalorder %s112, %s114
      %p121 = scmp.eq.s32.totalorder %s31, 1
      %p122 = por %p120, %p121
      %p123 = scmp.ne.s32.totalorder %s114, %s115
      %p124 = scmp.eq.s32.totalorder %s31, 0
      %p125 = por %p123, %p124
      %p126 = scmp.ne.s32.totalorder %s114, %s115
      %p127 = scmp.eq.s32.totalorder %s32, 1
      %p128 = por %p126, %p127
      %p130 = scmp.ne.s32.totalorder %s115, %s129
      %p131 = scmp.eq.s32.totalorder %s32, 0
      %p132 = por %p130, %p131
      %s134 = sadd.s32 %s133, 1
      %p137 = scmp.eq.s32.totalorder %s26, 1
      %p138 = scmp.ne.s32.totalorder %s133, %s135
      %p139 = scmp.eq.s32.totalorder %s26, 0
      %p140 = por %p138, %p139
      %p141 = scmp.ne.s32.totalorder %s133, %s135
      %p142 = scmp.eq.s32.totalorder %s31, 1
      %p143 = por %p141, %p142
      %p144 = scmp.ne.s32.totalorder %s135, %s136
      %p145 = scmp.eq.s32.totalorder %s31, 0
      %p146 = por %p144, %p145
      %p147 = scmp.ne.s32.totalorder %s135, %s136
      %p148 = scmp.eq.s32.totalorder %s32, 1
      %p149 = por %p147, %p148
      %p151 = scmp.ne.s32.totalorder %s136, %s150
      %p152 = scmp.eq.s32.totalorder %s32, 0
      %p153 = por %p151, %p152
      %s155 = sadd.s32 %s154, 1
      %p158 = scmp.eq.s32.totalorder %s26, 1
      %p159 = scmp.ne.s32.totalorder %s154, %s156
      %p160 = scmp.eq.s32.totalorder %s26, 0
      %p161 = por %p159, %p160
      %p162 = scmp.ne.s32.totalorder %s154, %s156
      %p163 = scmp.eq.s32.totalorder %s31, 1
      %p164 = por %p162, %p163
      %p165 = scmp.ne.s32.totalorder %s156, %s157
      %p166 = scmp.eq.s32.totalorder %s31, 0
      %p167 = por %p165, %p166
      %p168 = scmp.ne.s32.totalorder %s156, %s157
      %p169 = scmp.eq.s32.totalorder %s32, 1
      %p170 = por %p168, %p169
      %p172 = scmp.ne.s32.totalorder %s157, %s171
      %p173 = scmp.eq.s32.totalorder %s32, 0
      %p174 = por %p172, %p173
      %s176 = sadd.s32 %s175, 1
      %p179 = scmp.eq.s32.totalorder %s26, 1
      %p180 = scmp.ne.s32.totalorder %s175, %s177
      %p181 = scmp.eq.s32.totalorder %s26, 0
      %p182 = por %p180, %p181
      %p183 = scmp.ne.s32.totalorder %s175, %s177
      %p184 = scmp.eq.s32.totalorder %s31, 1
      %p185 = por %p183, %p184
      %p186 = scmp.ne.s32.totalorder %s177, %s178
      %p187 = scmp.eq.s32.totalorder %s31, 0
      %p188 = por %p186, %p187
      %p189 = scmp.ne.s32.totalorder %s177, %s178
      %p190 = scmp.eq.s32.totalorder %s32, 1
      %p191 = por %p189, %p190
      %p193 = scmp.ne.s32.totalorder %s178, %s192
      %p194 = scmp.eq.s32.totalorder %s32, 0
      %p195 = por %p193, %p194
      %s197 = sadd.s32 %s196, 1
      %p200 = scmp.eq.s32.totalorder %s26, 1
      %p201 = scmp.ne.s32.totalorder %s196, %s198
      %p202 = scmp.eq.s32.totalorder %s26, 0
      %p203 = por %p201, %p202
      %p204 = scmp.ne.s32.totalorder %s196, %s198
      %p205 = scmp.eq.s32.totalorder %s31, 1
      %p206 = por %p204, %p205
      %p207 = scmp.ne.s32.totalorder %s198, %s199
      %p208 = scmp.eq.s32.totalorder %s31, 0
      %p209 = por %p207, %p208
      %p210 = scmp.ne.s32.totalorder %s198, %s199
      %p211 = scmp.eq.s32.totalorder %s32, 1
      %p212 = por %p210, %p211
      %p214 = scmp.ne.s32.totalorder %s199, %s213
      %p215 = scmp.eq.s32.totalorder %s32, 0
      %p216 = por %p214, %p215
      %s218 = sadd.s32 %s217, 1
      %p221 = scmp.eq.s32.totalorder %s26, 1
      %p222 = scmp.ne.s32.totalorder %s217, %s219
      %p223 = scmp.eq.s32.totalorder %s26, 0
      %p224 = por %p222, %p223
      %p225 = scmp.ne.s32.totalorder %s217, %s219
      %p226 = scmp.eq.s32.totalorder %s31, 1
      %p227 = por %p225, %p226
      %p228 = scmp.ne.s32.totalorder %s219, %s220
      %p229 = scmp.eq.s32.totalorder %s31, 0
      %p230 = por %p228, %p229
      %p231 = scmp.ne.s32.totalorder %s219, %s220
      %p232 = scmp.eq.s32.totalorder %s32, 1
      %p233 = por %p231, %p232
      %p235 = scmp.ne.s32.totalorder %s220, %s234
      %p236 = scmp.eq.s32.totalorder %s32, 0
      %p237 = por %p235, %p236
      %s239 = sadd.s32 %s238, 1
      %p242 = scmp.eq.s32.totalorder %s26, 1
      %p243 = scmp.ne.s32.totalorder %s238, %s240
      %p244 = scmp.eq.s32.totalorder %s26, 0
      %p245 = por %p243, %p244
      %p246 = scmp.ne.s32.totalorder %s238, %s240
      %p247 = scmp.eq.s32.totalorder %s31, 1
      %p248 = por %p246, %p247
      %p249 = scmp.ne.s32.totalorder %s240, %s241
      %p250 = scmp.eq.s32.totalorder %s31, 0
      %p251 = por %p249, %p250
      %p252 = scmp.ne.s32.totalorder %s240, %s241
      %p253 = scmp.eq.s32.totalorder %s32, 1
      %p254 = por %p252, %p253
      %p256 = scmp.ne.s32.totalorder %s241, %s255
      %p257 = scmp.eq.s32.totalorder %s32, 0
      %p258 = por %p256, %p257
      %s260 = sadd.s32 %s259, 1
      %p263 = scmp.eq.s32.totalorder %s26, 1
      %p264 = scmp.ne.s32.totalorder %s259, %s261
      %p265 = scmp.eq.s32.totalorder %s26, 0
      %p266 = por %p264, %p265
      %p267 = scmp.ne.s32.totalorder %s259, %s261
      %p268 = scmp.eq.s32.totalorder %s31, 1
      %p269 = por %p267, %p268
      %p270 = scmp.ne.s32.totalorder %s261, %s262
      %p271 = scmp.eq.s32.totalorder %s31, 0
      %p272 = por %p270, %p271
      %p273 = scmp.ne.s32.totalorder %s261, %s262
      %p274 = scmp.eq.s32.totalorder %s32, 1
      %p275 = por %p273, %p274
      %p277 = scmp.ne.s32.totalorder %s262, %s276
      %p278 = scmp.eq.s32.totalorder %s32, 0
      %p279 = por %p277, %p278
      %s281 = sadd.s32 %s280, 1
      %p284 = scmp.eq.s32.totalorder %s26, 1
      %p285 = scmp.ne.s32.totalorder %s280, %s282
      %p286 = scmp.eq.s32.totalorder %s26, 0
      %p287 = por %p285, %p286
      %p288 = scmp.ne.s32.totalorder %s280, %s282
      %p289 = scmp.eq.s32.totalorder %s31, 1
      %p290 = por %p288, %p289
      %p291 = scmp.ne.s32.totalorder %s282, %s283
      %p292 = scmp.eq.s32.totalorder %s31, 0
      %p293 = por %p291, %p292
      %p294 = scmp.ne.s32.totalorder %s282, %s283
      %p295 = scmp.eq.s32.totalorder %s32, 1
      %p296 = por %p294, %p295
      %p298 = scmp.ne.s32.totalorder %s283, %s297
      %p299 = scmp.eq.s32.totalorder %s32, 0
      %p300 = por %p298, %p299
      %s302 = sadd.s32 %s301, 1
      %p305 = scmp.eq.s32.totalorder %s26, 1
      %p306 = scmp.ne.s32.totalorder %s301, %s303
      %p307 = scmp.eq.s32.totalorder %s26, 0
      %p308 = por %p306, %p307
      %p309 = scmp.ne.s32.totalorder %s301, %s303
      %p310 = scmp.eq.s32.totalorder %s31, 1
      %p311 = por %p309, %p310
      %p312 = scmp.ne.s32.totalorder %s303, %s304
      %p313 = scmp.eq.s32.totalorder %s31, 0
      %p314 = por %p312, %p313
      %p315 = scmp.ne.s32.totalorder %s303, %s304
      %p316 = scmp.eq.s32.totalorder %s32, 1
      %p317 = por %p315, %p316
      %p319 = scmp.ne.s32.totalorder %s304, %s318
      %p320 = scmp.eq.s32.totalorder %s32, 0
      %p321 = por %p319, %p320
      %s323 = sadd.s32 %s322, 1
      %p326 = scmp.eq.s32.totalorder %s26, 1
      %p327 = scmp.ne.s32.totalorder %s322, %s324
      %p328 = scmp.eq.s32.totalorder %s26, 0
      %p329 = por %p327, %p328
      %p330 = scmp.ne.s32.totalorder %s322, %s324
      %p331 = scmp.eq.s32.totalorder %s31, 1
      %p332 = por %p330, %p331
      %p333 = scmp.ne.s32.totalorder %s324, %s325
      %p334 = scmp.eq.s32.totalorder %s31, 0
      %p335 = por %p333, %p334
      %p336 = scmp.ne.s32.totalorder %s324, %s325
      %p337 = scmp.eq.s32.totalorder %s32, 1
      %p338 = por %p336, %p337
      %p340 = scmp.ne.s32.totalorder %s325, %s339
      %p341 = scmp.eq.s32.totalorder %s32, 0
      %p342 = por %p340, %p341
      %s344 = sadd.s32 %s343, 1
      %p347 = scmp.eq.s32.totalorder %s26, 1
      %p348 = scmp.ne.s32.totalorder %s343, %s345
      %p349 = scmp.eq.s32.totalorder %s26, 0
      %p350 = por %p348, %p349
      %p351 = scmp.ne.s32.totalorder %s343, %s345
      %p352 = scmp.eq.s32.totalorder %s31, 1
      %p353 = por %p351, %p352
      %p354 = scmp.ne.s32.totalorder %s345, %s346
      %p355 = scmp.eq.s32.totalorder %s31, 0
      %p356 = por %p354, %p355
      %p357 = scmp.ne.s32.totalorder %s345, %s346
      %p358 = scmp.eq.s32.totalorder %s32, 1
      %p359 = por %p357, %p358
      %p361 = scmp.ne.s32.totalorder %s346, %s360
      %p362 = scmp.eq.s32.totalorder %s32, 0
      %p363 = por %p361, %p362
      %s365 = sadd.s32 %s364, 1
      %p368 = scmp.eq.s32.totalorder %s26, 1
      %p369 = scmp.ne.s32.totalorder %s364, %s366
      %p370 = scmp.eq.s32.totalorder %s26, 0
      %p371 = por %p369, %p370
      %p372 = scmp.ne.s32.totalorder %s364, %s366
      %p373 = scmp.eq.s32.totalorder %s31, 1
      %p374 = por %p372, %p373
      %p375 = scmp.ne.s32.totalorder %s366, %s367
      %p376 = scmp.eq.s32.totalorder %s31, 0
      %p377 = por %p375, %p376
      %p378 = scmp.ne.s32.totalorder %s366, %s367
      %p379 = scmp.eq.s32.totalorder %s32, 1
      %p380 = por %p378, %p379
      %p382 = scmp.ne.s32.totalorder %s367, %s381
      %p383 = scmp.eq.s32.totalorder %s32, 0
      %p384 = por %p382, %p383
      %s385 = ssub.s32 %s26, %s33
      %p386 = scmp.eq.s32.totalorder %s385, 0
      %s388 = sadd.s32 %s387, 1
      %s389 = scalar_select %p386, %s387, %s388
      %p392 = pneg %p386
      %p393 = scmp.eq.s32.totalorder %s26, 1
      %p394 = por %p392, %p393
      %p395 = scmp.ne.s32.totalorder %s387, %s390
      %p396 = scmp.eq.s32.totalorder %s26, 0
      %p397 = por %p395, %p396
      %p398 = scmp.ne.s32.totalorder %s387, %s390
      %p399 = scmp.eq.s32.totalorder %s31, 1
      %p400 = por %p398, %p399
      %p401 = scmp.ne.s32.totalorder %s390, %s391
      %p402 = scmp.eq.s32.totalorder %s31, 0
      %p403 = por %p401, %p402
      %p404 = scmp.ne.s32.totalorder %s390, %s391
      %p405 = scmp.eq.s32.totalorder %s32, 1
      %p406 = por %p404, %p405
      %p408 = scmp.ne.s32.totalorder %s391, %s407
      %p409 = scmp.eq.s32.totalorder %s32, 0
      %p410 = por %p408, %p409
      %p411 = scmp.le.s32.totalorder 1, %s26
      %p412 = scmp.lt.s32.totalorder %s26, 3
      %p413 = pnand %p411, %p412
      %p414 = pneg %p413
      // Predicated region
      $region9: #{tpu_custom_call.1} parent=5 // pred_check
        _
      $region10: #{tpu_custom_call.1} parent=5 // pred_check_branch
        %416 = sbr.rel (%p413) target = $region12
      $region11: #{tpu_custom_call.1} parent=5 // pred_region
        %s417 = ssub.s32 %s26, 1
        // Predicated region
        $region13: #{tpu_custom_call.1} parent=11 // pred_check
          %p418 = pneg %p125
        $region14: #{tpu_custom_call.1} parent=11 // pred_check_branch
          %420 = sbr.rel (%p418) target = $region16
        $region15: #{tpu_custom_call.1} parent=11 // pred_region
          _
        $region16: #{tpu_custom_call.1} parent=11 // pred_fallthru
          _
        // Predicated region
        $region17: #{tpu_custom_call.1} parent=11 // pred_check
          %p421 = pneg %p146
        $region18: #{tpu_custom_call.1} parent=11 // pred_check_branch
          %423 = sbr.rel (%p421) target = $region20
        $region19: #{tpu_custom_call.1} parent=11 // pred_region
          %s425 = ssub.s32 16, 16
          %426 = vsyncadd [#allocation3], %s425
          %s428 = sshll.u32 [#allocation2], 4
          %s429 = int_to_ptr.vmem [resolvable:$true] %s428
          %431 = dma.hbm_to_vmem [thread:$0]  %s4, 16, %s429, [#allocation3]
        $region20: #{tpu_custom_call.1} parent=11 // pred_fallthru
          _
        // Predicated region
        $region21: #{tpu_custom_call.1} parent=11 // pred_check
          %p432 = pneg %p167
        $region22: #{tpu_custom_call.1} parent=11 // pred_check_branch
          %434 = sbr.rel (%p432) target = $region24
        $region23: #{tpu_custom_call.1} parent=11 // pred_region
          _
        $region24: #{tpu_custom_call.1} parent=11 // pred_fallthru
          _
        // Predicated region
        $region25: #{tpu_custom_call.1} parent=11 // pred_check
          %p435 = pneg %p188
        $region26: #{tpu_custom_call.1} parent=11 // pred_check_branch
          %437 = sbr.rel (%p435) target = $region28
        $region27: #{tpu_custom_call.1} parent=11 // pred_region
          _
        $region28: #{tpu_custom_call.1} parent=11 // pred_fallthru
          _
        // Predicated region
        $region29: #{tpu_custom_call.1} parent=11 // pred_check
          %p438 = pneg %p209
        $region30: #{tpu_custom_call.1} parent=11 // pred_check_branch
          %440 = sbr.rel (%p438) target = $region32
        $region31: #{tpu_custom_call.1} parent=11 // pred_region
          _
        $region32: #{tpu_custom_call.1} parent=11 // pred_fallthru
          _
        // Predicated region
        $region33: #{tpu_custom_call.1} parent=11 // pred_check
          %p441 = pneg %p230
        $region34: #{tpu_custom_call.1} parent=11 // pred_check_branch
          %443 = sbr.rel (%p441) target = $region36
        $region35: #{tpu_custom_call.1} parent=11 // pred_region
          _
        $region36: #{tpu_custom_call.1} parent=11 // pred_fallthru
          _
        // Predicated region
        $region37: #{tpu_custom_call.1} parent=11 // pred_check
          %p444 = pneg %p251
        $region38: #{tpu_custom_call.1} parent=11 // pred_check_branch
          %446 = sbr.rel (%p444) target = $region40
        $region39: #{tpu_custom_call.1} parent=11 // pred_region
          _
        $region40: #{tpu_custom_call.1} parent=11 // pred_fallthru
          _
        // Predicated region
        $region41: #{tpu_custom_call.1} parent=11 // pred_check
          %p447 = pneg %p272
        $region42: #{tpu_custom_call.1} parent=11 // pred_check_branch
          %449 = sbr.rel (%p447) target = $region44
        $region43: #{tpu_custom_call.1} parent=11 // pred_region
          _
        $region44: #{tpu_custom_call.1} parent=11 // pred_fallthru
          _
        // Predicated region
        $region45: #{tpu_custom_call.1} parent=11 // pred_check
          %p450 = pneg %p293
        $region46: #{tpu_custom_call.1} parent=11 // pred_check_branch
          %452 = sbr.rel (%p450) target = $region48
        $region47: #{tpu_custom_call.1} parent=11 // pred_region
          _
        $region48: #{tpu_custom_call.1} parent=11 // pred_fallthru
          _
        // Predicated region
        $region49: #{tpu_custom_call.1} parent=11 // pred_check
          %p453 = pneg %p314
        $region50: #{tpu_custom_call.1} parent=11 // pred_check_branch
          %455 = sbr.rel (%p453) target = $region52
        $region51: #{tpu_custom_call.1} parent=11 // pred_region
          _
        $region52: #{tpu_custom_call.1} parent=11 // pred_fallthru
          _
        // Predicated region
        $region53: #{tpu_custom_call.1} parent=11 // pred_check
          %p456 = pneg %p335
        $region54: #{tpu_custom_call.1} parent=11 // pred_check_branch
          %458 = sbr.rel (%p456) target = $region56
        $region55: #{tpu_custom_call.1} parent=11 // pred_region
          _
        $region56: #{tpu_custom_call.1} parent=11 // pred_fallthru
          _
        // Predicated region
        $region57: #{tpu_custom_call.1} parent=11 // pred_check
          %p459 = pneg %p356
        $region58: #{tpu_custom_call.1} parent=11 // pred_check_branch
          %461 = sbr.rel (%p459) target = $region60
        $region59: #{tpu_custom_call.1} parent=11 // pred_region
          _
        $region60: #{tpu_custom_call.1} parent=11 // pred_fallthru
          _
        // Predicated region
        $region61: #{tpu_custom_call.1} parent=11 // pred_check
          %p462 = pneg %p377
        $region62: #{tpu_custom_call.1} parent=11 // pred_check_branch
          %464 = sbr.rel (%p462) target = $region64
        $region63: #{tpu_custom_call.1} parent=11 // pred_region
          _
        $region64: #{tpu_custom_call.1} parent=11 // pred_fallthru
          _
      $region12: #{tpu_custom_call.1} parent=5 // pred_fallthru
        _
      %p465 = scmp.lt.s32.totalorder %s26, 2
      // Predicated region
      $region65: #{tpu_custom_call.1} parent=5 // pred_check
        %p466 = pneg %p465
      $region66: #{tpu_custom_call.1} parent=5 // pred_check_branch
        %468 = sbr.rel (%p466) target = $region68
      $region67: #{tpu_custom_call.1} parent=5 // pred_region
        // Predicated region
        $region69: #{tpu_custom_call.1} parent=67 // pred_check
          %p469 = pneg %p46
        $region70: #{tpu_custom_call.1} parent=67 // pred_check_branch
          %471 = sbr.rel (%p469) target = $region72
        $region71: #{tpu_custom_call.1} parent=67 // pred_region
          %s472 = smul.u32 3, %s26
          %p473 = scmp.lt.s32.totalorder %s472, 5
          %s474 = scalar_select %p473, %s472, 5
          %s475 = smul.addr %s474, 4
          %s476 = scalar_lea.vmem %s0, %s475
          %s477 = smul.u32 3, %s26
        $region72: #{tpu_custom_call.1} parent=67 // pred_fallthru
          _
        // Predicated region
        $region73: #{tpu_custom_call.1} parent=67 // pred_check
          %p478 = pneg %p72
        $region74: #{tpu_custom_call.1} parent=67 // pred_check_branch
          %480 = sbr.rel (%p478) target = $region76
        $region75: #{tpu_custom_call.1} parent=67 // pred_region
          %s481 = smul.u32 3, %s26
          %p482 = scmp.lt.s32.totalorder %s481, 5
          %s483 = scalar_select %p482, %s481, 5
          %s484 = smul.addr %s483, 8
          %s485 = scalar_lea.vmem %s1, %s484
          %s486 = smul.u32 3, %s26
        $region76: #{tpu_custom_call.1} parent=67 // pred_fallthru
          _
        // Predicated region
        $region77: #{tpu_custom_call.1} parent=67 // pred_check
          %p487 = pneg %p98
        $region78: #{tpu_custom_call.1} parent=67 // pred_check_branch
          %489 = sbr.rel (%p487) target = $region80
        $region79: #{tpu_custom_call.1} parent=67 // pred_region
          %s490 = smul.u32 3, %s26
          %p491 = scmp.lt.s32.totalorder %s490, 5
          %s492 = scalar_select %p491, %s490, 5
          %s493 = smul.addr %s492, 8
          %s494 = scalar_lea.vmem %s2, %s493
          %s495 = smul.u32 3, %s26
        $region80: #{tpu_custom_call.1} parent=67 // pred_fallthru
          _
      $region68: #{tpu_custom_call.1} parent=5 // pred_fallthru
        _
      %p496 = scmp.le.s32.totalorder 1, %s26
      %p497 = scmp.lt.s32.totalorder %s26, 3
      %p498 = pnand %p496, %p497
      %p499 = pneg %p498
      // Predicated region
      $region81: #{tpu_custom_call.1} parent=5 // pred_check
        _
      $region82: #{tpu_custom_call.1} parent=5 // pred_check_branch
        %501 = sbr.rel (%p498) target = $region84
      $region83: #{tpu_custom_call.1} parent=5 // pred_region
        %s502 = ssub.s32 %s26, 1
        // Predicated region
        $region85: #{tpu_custom_call.1} parent=83 // pred_check
          %p503 = pneg %p146
        $region86: #{tpu_custom_call.1} parent=83 // pred_check_branch
          %505 = sbr.rel (%p503) target = $region88
        $region87: #{tpu_custom_call.1} parent=83 // pred_region
          %506 = dma.done [#allocation3], 16
        $region88: #{tpu_custom_call.1} parent=83 // pred_fallthru
          _
        %s507 = smul.u32 3, %s31
        %p508 = scmp.lt.s32.totalorder %s507, 5
        %s509 = scalar_select %p508, %s507, 5
        %s510 = smul.addr %s509, 4
        %s511 = scalar_lea.vmem %s0, %s510
        %p512 = pneg %p52
        %p513 = pneg %p49
        %s514 = smul.u32 3, %s31
        %p515 = scmp.lt.s32.totalorder %s514, 5
        %s516 = scalar_select %p515, %s514, 5
        %s517 = smul.addr %s516, 8
        %s518 = scalar_lea.vmem %s1, %s517
        %p519 = pneg %p78
        %p520 = pneg %p75
        %s521 = smul.u32 3, %s31
        %p522 = scmp.lt.s32.totalorder %s521, 5
        %s523 = scalar_select %p522, %s521, 5
        %s524 = smul.addr %s523, 8
        %s525 = scalar_lea.vmem %s2, %s524
        %p526 = pneg %p104
        %p527 = pneg %p101
        %p528 = pneg %p125
        %p529 = pneg %p122
        %p530 = pneg %p146
        %p531 = pneg %p143
        %p532 = pneg %p167
        %p533 = pneg %p164
        %p534 = pneg %p188
        %p535 = pneg %p185
        %p536 = pneg %p209
        %p537 = pneg %p206
        %p538 = pneg %p230
        %p539 = pneg %p227
        %p540 = pneg %p251
        %p541 = pneg %p248
        %p542 = pneg %p272
        %p543 = pneg %p269
        %p544 = pneg %p293
        %p545 = pneg %p290
        %p546 = pneg %p314
        %p547 = pneg %p311
        %p548 = pneg %p335
        %p549 = pneg %p332
        %p550 = pneg %p356
        %p551 = pneg %p353
        %p552 = pneg %p377
        %p553 = pneg %p374
        %p554 = pneg %p403
        %p555 = pneg %p400
        %s556 = sand.u32 %s390, 1
        %s557 = scalar_lea.sflag [#allocation4], %s556
        %s558 = sand.u32 %s390, 1
        %s559 = scalar_lea.vmem [#allocation5], %s558
        %s560 = smul.u32 3, %s31
        %p561 = scmp.lt.s32.totalorder %s560, 5
        %s562 = scalar_select %p561, %s560, 5
        %s563 = smul.addr %s562, 4
        %s564 = scalar_lea.vmem %s0, %s563
        %s565 = smul.u32 3, %s31
        %s566 = smul.u32 3, %s31
        %p567 = scmp.lt.s32.totalorder %s566, 5
        %s568 = scalar_select %p567, %s566, 5
        %s569 = smul.addr %s568, 8
        %s570 = scalar_lea.vmem %s1, %s569
        %s571 = smul.u32 3, %s31
        %s572 = smul.u32 3, %s31
        %p573 = scmp.lt.s32.totalorder %s572, 5
        %s574 = scalar_select %p573, %s572, 5
        %s575 = smul.addr %s574, 8
        %s576 = scalar_lea.vmem %s2, %s575
        %s577 = smul.u32 3, %s31
        %v579 = vld [vmem:[%s564] sm:$0xf]
        %v580 = vld [vmem:[%s564 + $0x4] sm:$0xf]
        %v581 = vld [vmem:[%s564 + $0x8] sm:$0xf]
        %v582 = vld [vmem:[%s3] sm:$0xf]
        %v583 = vld [vmem:[%s3 + $0x4] sm:$0xf]
        %v584 = vld [vmem:[%s3 + $0x8] sm:$0xf]
        %v585 = vld [vmem:[%s3 + $0xc] sm:$0xf]
        %v586 = vld [vmem:[#allocation2] sm:$0x1]
        %v588 = vlaneseq
        %v589 = vshrl.u32 %v588, 7
        %v590 = vsub.s32 0, %v589
        %v591 = vrot.slane %v586, %v590
        %v596 = vunpack.c.l.b16 %v579
        %v597 = vunpack.c.l.b16 %v580
        %v598 = vunpack.c.l.b16 %v581
        %v599 = vpack.c.b16 %v597, %v596
        %v600 = vpack.c.b16 %v598, %v598
        %v605 = vunpack.c.l.b16 %v582
        %v606 = vunpack.c.l.b16 %v583
        %v607 = vunpack.c.l.b16 %v584
        %v608 = vunpack.c.l.b16 %v585
        %v609 = vpack.c.b16 %v606, %v605
        %v610 = vpack.c.b16 %v608, %v607
        %vm613 = vcmask 261120
        %v615 = vsel %vm613, %v599, 0
        %v618 = vsel %vm613, %v600, 0
        %620 = vmatprep.subr.bf16.mxu0 0
        %621 = vmatpush1.bf16.msra.mxu0 %v609
        %622 = vmatprep.subr.bf16.mxu0 0
        %623 = vmatpush1.bf16.msra.mxu0 %v610
        %624 = vmatprep.subr.bf16.mxu0 0
        %625 = vmatpush1.bf16.msra.mxu0 0
        %626 = vmatprep.subr.bf16.mxu0 0
        %627 = vmatpush1.bf16.msra.mxu0 0
        %628 = vmatprep.subr.bf16.mxu0 0
        %629 = vmatpush1.bf16.msra.mxu0 0
        %630 = vmatprep.subr.bf16.mxu0 0
        %631 = vmatpush1.bf16.msra.mxu0 0
        %632 = vmatprep.subr.bf16.mxu0 0
        %633 = vmatpush1.bf16.msra.mxu0 0
        %634 = vmatprep.subr.bf16.mxu0 0
        %635 = vmatpush1.bf16.msra.mxu0 0
        %636 = vmatprep.subr.bf16.mxu0 0
        %637 = vmatpush1.bf16.msra.mxu0 0
        %638 = vmatprep.subr.bf16.mxu0 0
        %639 = vmatpush1.bf16.msra.mxu0 0
        %640 = vmatprep.subr.bf16.mxu0 0
        %641 = vmatpush1.bf16.msra.mxu0 0
        %642 = vmatprep.subr.bf16.mxu0 0
        %643 = vmatpush1.bf16.msra.mxu0 0
        %644 = vmatprep.subr.bf16.mxu0 0
        %645 = vmatpush1.bf16.msra.mxu0 0
        %646 = vmatprep.subr.bf16.mxu0 0
        %647 = vmatpush1.bf16.msra.mxu0 0
        %648 = vmatprep.subr.bf16.mxu0 0
        %649 = vmatpush1.bf16.msra.mxu0 0
        %650 = vmatprep.subr.bf16.mxu0 0
        %651 = vmatpush1.bf16.msra.mxu0 0
        %652 = vmatprep.mubr.bf16.mxu0 0
        %653 = vmatmul.mubr.bf16.gmra.mrb[0].mxu0 %v615
        %v654 = vpop.f32.mrb[0].mxu0
        %v655 = vadd.f32 %v591, %v654
        %v656 = vpop.f32.mrb[0].mxu0
        %v657 = vpop.f32.mrb[0].mxu0
        %v658 = vadd.f32 %v591, %v657
        %v659 = vpop.f32.mrb[0].mxu0
        %660 = vmatprep.mubr.bf16.mxu0 0
        %661 = vmatmul.mubr.bf16.gmra.mrb[0].mxu0 %v618
        %v662 = vpop.f32.mrb[0].mxu0
        %v663 = vadd.f32 %v591, %v662
        %v664 = vpop.f32.mrb[0].mxu0
        %v665 = vpop.f32.mrb[0].mxu0
        %v666 = vpop.f32.mrb[0].mxu0
        %667 = vdwg.mxu0
        %v668 = vld [vmem:[%s5] sm:$0x1]
        %v669 = vld [vmem:[%s6] sm:$0x1]
        %vm670 = vcmask 523264
        %v671 = vsel %vm670, %v655, 0.0
        %672 = vadd.xlane.f32.xlu0 %v671
        %v673 = vpop.xlane.xlu0 %672
        %v674 = vsel %vm670, %v658, 0.0
        %675 = vadd.xlane.f32.xlu0 %v674
        %v676 = vpop.xlane.xlu0 %675
        %v677 = vsel %vm670, %v663, 0.0
        %678 = vadd.xlane.f32.xlu0 %v677
        %v679 = vpop.xlane.xlu0 %678
        %v680 = vrcp.pop 64.0
        %v681 = vmul.f32 %v673, %v680
        %v682 = vmul.f32 %v676, %v680
        %v683 = vmul.f32 %v679, %v680
        %v684 = vsub.f32 %v655, %v681
        %v685 = vsub.f32 %v658, %v682
        %v686 = vsub.f32 %v663, %v683
        %v687 = vmul.f32 %v684, %v684
        %v688 = vmul.f32 %v685, %v685
        %v689 = vmul.f32 %v686, %v686
        %v690 = vsel %vm670, %v687, 0.0
        %691 = vadd.xlane.f32.xlu0 %v690
        %v692 = vpop.xlane.xlu0 %691
        %v693 = vsel %vm670, %v688, 0.0
        %694 = vadd.xlane.f32.xlu0 %v693
        %v695 = vpop.xlane.xlu0 %694
        %v696 = vsel %vm670, %v689, 0.0
        %697 = vadd.xlane.f32.xlu0 %v696
        %v698 = vpop.xlane.xlu0 %697
        %v699 = vmul.f32 %v692, %v680
        %v700 = vmul.f32 %v695, %v680
        %v701 = vmul.f32 %v698, %v680
        %v702 = vadd.f32 %v699, 1e-05
        %v703 = vadd.f32 %v700, 1e-05
        %v704 = vadd.f32 %v701, 1e-05
        %v705 = vrsqrt.pop %v702
        %v706 = vrsqrt.pop %v703
        %v707 = vrsqrt.pop %v704
        %v708 = vmul.f32 %v684, %v705
        %v709 = vmul.f32 %v685, %v706
        %v710 = vmul.f32 %v686, %v707
        %v712 = vlaneseq
        %v713 = vshrl.u32 %v712, 7
        %v714 = vsub.s32 0, %v713
        %v715 = vrot.slane %v668, %v714
        %v717 = vmul.f32 %v708, %v715
        %v718 = vmul.f32 %v709, %v715
        %v719 = vmul.f32 %v710, %v715
        %v721 = vlaneseq
        %v722 = vshrl.u32 %v721, 7
        %v723 = vsub.s32 0, %v722
        %v724 = vrot.slane %v669, %v723
        %v726 = vadd.f32 %v717, %v724
        %v727 = vadd.f32 %v718, %v724
        %v728 = vadd.f32 %v719, %v724
        %v729 = vpack.c.bf16 %v727, %v726
        %v730 = vpack.c.bf16 %v728, %v728
        %v731 = vld [vmem:[%s7] sm:$0xf]
        %v732 = vld [vmem:[%s7 + $0x4] sm:$0xf]
        %v733 = vld [vmem:[%s7 + $0x8] sm:$0xf]
        %v734 = vld [vmem:[%s7 + $0xc] sm:$0xf]
        %v735 = vld [vmem:[%s7 + $0x10] sm:$0xf]
        %v736 = vld [vmem:[%s7 + $0x14] sm:$0xf]
        %v737 = vld [vmem:[%s7 + $0x18] sm:$0xf]
        %v738 = vld [vmem:[%s7 + $0x1c] sm:$0xf]
        %v739 = vld [vmem:[%s8] sm:$0x1]
        %v741 = vlaneseq
        %v742 = vshrl.u32 %v741, 7
        %v743 = vsub.s32 0, %v742
        %v744 = vrot.slane %v739, %v743
        %v754 = vunpack.c.l.b16 %v731
        %v755 = vunpack.c.l.b16 %v732
        %v756 = vunpack.c.l.b16 %v733
        %v757 = vunpack.c.l.b16 %v734
        %v758 = vunpack.c.l.b16 %v735
        %v759 = vunpack.c.l.b16 %v736
        %v760 = vunpack.c.l.b16 %v737
        %v761 = vunpack.c.l.b16 %v738
        %v762 = vpack.c.b16 %v755, %v754
        %v763 = vpack.c.b16 %v757, %v756
        %v764 = vpack.c.b16 %v759, %v758
        %v765 = vpack.c.b16 %v761, %v760
        %v771 = vsel %vm670, %v729, 0
        %v774 = vsel %vm670, %v730, 0
        %776 = vmatprep.subr.bf16.mxu0 0
        %777 = vmatpush1.bf16.msra.mxu0 %v762
        %778 = vmatprep.subr.bf16.mxu0 0
        %779 = vmatpush1.bf16.msra.mxu0 %v763
        %780 = vmatprep.subr.bf16.mxu0 0
        %781 = vmatpush1.bf16.msra.mxu0 %v764
        %782 = vmatprep.subr.bf16.mxu0 0
        %783 = vmatpush1.bf16.msra.mxu0 %v765
        %784 = vmatprep.subr.bf16.mxu0 0
        %785 = vmatpush1.bf16.msra.mxu0 0
        %786 = vmatprep.subr.bf16.mxu0 0
        %787 = vmatpush1.bf16.msra.mxu0 0
        %788 = vmatprep.subr.bf16.mxu0 0
        %789 = vmatpush1.bf16.msra.mxu0 0
        %790 = vmatprep.subr.bf16.mxu0 0
        %791 = vmatpush1.bf16.msra.mxu0 0
        %792 = vmatprep.subr.bf16.mxu0 0
        %793 = vmatpush1.bf16.msra.mxu0 0
        %794 = vmatprep.subr.bf16.mxu0 0
        %795 = vmatpush1.bf16.msra.mxu0 0
        %796 = vmatprep.subr.bf16.mxu0 0
        %797 = vmatpush1.bf16.msra.mxu0 0
        %798 = vmatprep.subr.bf16.mxu0 0
        %799 = vmatpush1.bf16.msra.mxu0 0
        %800 = vmatprep.subr.bf16.mxu0 0
        %801 = vmatpush1.bf16.msra.mxu0 0
        %802 = vmatprep.subr.bf16.mxu0 0
        %803 = vmatpush1.bf16.msra.mxu0 0
        %804 = vmatprep.subr.bf16.mxu0 0
        %805 = vmatpush1.bf16.msra.mxu0 0
        %806 = vmatprep.subr.bf16.mxu0 0
        %807 = vmatpush1.bf16.msra.mxu0 0
        %808 = vmatprep.mubr.bf16.mxu0 0
        %809 = vmatmul.mubr.bf16.gmra.mrb[0].mxu0 %v771
        %v810 = vpop.f32.mrb[0].mxu0
        %v811 = vadd.f32 %v744, %v810
        %v812 = vpop.f32.mrb[0].mxu0
        %v813 = vpop.f32.mrb[0].mxu0
        %v814 = vadd.f32 %v744, %v813
        %v815 = vpop.f32.mrb[0].mxu0
        %816 = vmatprep.mubr.bf16.mxu0 0
        %817 = vmatmul.mubr.bf16.gmra.mrb[0].mxu0 %v774
        %v818 = vpop.f32.mrb[0].mxu0
        %v819 = vadd.f32 %v744, %v818
        %v820 = vpop.f32.mrb[0].mxu0
        %v821 = vpop.f32.mrb[0].mxu0
        %v822 = vpop.f32.mrb[0].mxu0
        %823 = vdwg.mxu0
        %v824 = vxor.u32 %v811, 2147483648
        %v825 = vxor.u32 %v814, 2147483648
        %v826 = vxor.u32 %v819, 2147483648
        %v827 = vmul.f32 %v824, 1.442695
        %v828 = vpow.pop %v827
        %v829 = vmul.f32 %v825, 1.442695
        %v830 = vpow.pop %v829
        %v831 = vmul.f32 %v826, 1.442695
        %v832 = vpow.pop %v831
        %v833 = vadd.f32 %v828, 1.0
        %v834 = vadd.f32 %v830, 1.0
        %v835 = vadd.f32 %v832, 1.0
        %v836 = vrcp.pop %v833
        %v837 = vmul.f32 1.0, %v836
        %v838 = vrcp.pop %v834
        %v839 = vmul.f32 1.0, %v838
        %v840 = vrcp.pop %v835
        %v841 = vmul.f32 1.0, %v840
        %v842 = vmul.f32 %v811, %v837
        %v843 = vmul.f32 %v814, %v839
        %v844 = vmul.f32 %v819, %v841
        %v845 = vpack.c.bf16 %v843, %v842
        %v846 = vpack.c.bf16 %v844, %v844
        %v847 = vld [vmem:[%s9] sm:$0xf]
        %v848 = vld [vmem:[%s9 + $0x4] sm:$0xf]
        %v849 = vld [vmem:[%s9 + $0x8] sm:$0xf]
        %v850 = vld [vmem:[%s9 + $0xc] sm:$0xf]
        %v851 = vld [vmem:[%s9 + $0x10] sm:$0xf]
        %v852 = vld [vmem:[%s9 + $0x14] sm:$0xf]
        %v853 = vld [vmem:[%s9 + $0x18] sm:$0xf]
        %v854 = vld [vmem:[%s9 + $0x1c] sm:$0xf]
        %v855 = vld [vmem:[%s10] sm:$0x1]
        %v857 = vlaneseq
        %v858 = vshrl.u32 %v857, 7
        %v859 = vsub.s32 0, %v858
        %v860 = vrot.slane %v855, %v859
        %v870 = vunpack.c.l.b16 %v847
        %v871 = vunpack.c.l.b16 %v848
        %v872 = vunpack.c.l.b16 %v849
        %v873 = vunpack.c.l.b16 %v850
        %v874 = vunpack.c.l.b16 %v851
        %v875 = vunpack.c.l.b16 %v852
        %v876 = vunpack.c.l.b16 %v853
        %v877 = vunpack.c.l.b16 %v854
        %v878 = vpack.c.b16 %v871, %v870
        %v879 = vpack.c.b16 %v873, %v872
        %v880 = vpack.c.b16 %v875, %v874
        %v881 = vpack.c.b16 %v877, %v876
        %v887 = vsel %vm670, %v845, 0
        %v890 = vsel %vm670, %v846, 0
        %892 = vmatprep.subr.bf16.mxu0 0
        %893 = vmatpush1.bf16.msra.mxu0 %v878
        %894 = vmatprep.subr.bf16.mxu0 0
        %895 = vmatpush1.bf16.msra.mxu0 %v879
        %896 = vmatprep.subr.bf16.mxu0 0
        %897 = vmatpush1.bf16.msra.mxu0 %v880
        %898 = vmatprep.subr.bf16.mxu0 0
        %899 = vmatpush1.bf16.msra.mxu0 %v881
        %900 = vmatprep.subr.bf16.mxu0 0
        %901 = vmatpush1.bf16.msra.mxu0 0
        %902 = vmatprep.subr.bf16.mxu0 0
        %903 = vmatpush1.bf16.msra.mxu0 0
        %904 = vmatprep.subr.bf16.mxu0 0
        %905 = vmatpush1.bf16.msra.mxu0 0
        %906 = vmatprep.subr.bf16.mxu0 0
        %907 = vmatpush1.bf16.msra.mxu0 0
        %908 = vmatprep.subr.bf16.mxu0 0
        %909 = vmatpush1.bf16.msra.mxu0 0
        %910 = vmatprep.subr.bf16.mxu0 0
        %911 = vmatpush1.bf16.msra.mxu0 0
        %912 = vmatprep.subr.bf16.mxu0 0
        %913 = vmatpush1.bf16.msra.mxu0 0
        %914 = vmatprep.subr.bf16.mxu0 0
        %915 = vmatpush1.bf16.msra.mxu0 0
        %916 = vmatprep.subr.bf16.mxu0 0
        %917 = vmatpush1.bf16.msra.mxu0 0
        %918 = vmatprep.subr.bf16.mxu0 0
        %919 = vmatpush1.bf16.msra.mxu0 0
        %920 = vmatprep.subr.bf16.mxu0 0
        %921 = vmatpush1.bf16.msra.mxu0 0
        %922 = vmatprep.subr.bf16.mxu0 0
        %923 = vmatpush1.bf16.msra.mxu0 0
        %924 = vmatprep.mubr.bf16.mxu0 0
        %925 = vmatmul.mubr.bf16.gmra.mrb[0].mxu0 %v887
        %v926 = vpop.f32.mrb[0].mxu0
        %v927 = vadd.f32 %v860, %v926
        %v928 = vpop.f32.mrb[0].mxu0
        %v929 = vpop.f32.mrb[0].mxu0
        %v930 = vadd.f32 %v860, %v929
        %v931 = vpop.f32.mrb[0].mxu0
        %932 = vmatprep.mubr.bf16.mxu0 0
        %933 = vmatmul.mubr.bf16.gmra.mrb[0].mxu0 %v890
        %v934 = vpop.f32.mrb[0].mxu0
        %v935 = vadd.f32 %v860, %v934
        %v936 = vpop.f32.mrb[0].mxu0
        %v937 = vpop.f32.mrb[0].mxu0
        %v938 = vpop.f32.mrb[0].mxu0
        %939 = vdwg.mxu0
        %v940 = vadd.f32 %v655, %v927
        %v941 = vadd.f32 %v658, %v930
        %v942 = vadd.f32 %v663, %v935
        %s943 = scalar_lea.vmem %s5, 1
        %v944 = vld [vmem:[%s943] sm:$0x1]
        %s945 = scalar_lea.vmem %s6, 1
        %v946 = vld [vmem:[%s945] sm:$0x1]
        %v947 = vsel %vm670, %v940, 0.0
        %948 = vadd.xlane.f32.xlu0 %v947
        %v949 = vpop.xlane.xlu0 %948
        %v950 = vsel %vm670, %v941, 0.0
        %951 = vadd.xlane.f32.xlu0 %v950
        %v952 = vpop.xlane.xlu0 %951
        %v953 = vsel %vm670, %v942, 0.0
        %954 = vadd.xlane.f32.xlu0 %v953
        %v955 = vpop.xlane.xlu0 %954
        %v956 = vmul.f32 %v949, %v680
        %v957 = vmul.f32 %v952, %v680
        %v958 = vmul.f32 %v955, %v680
        %v959 = vsub.f32 %v940, %v956
        %v960 = vsub.f32 %v941, %v957
        %v961 = vsub.f32 %v942, %v958
        %v962 = vmul.f32 %v959, %v959
        %v963 = vmul.f32 %v960, %v960
        %v964 = vmul.f32 %v961, %v961
        %v965 = vsel %vm670, %v962, 0.0
        %966 = vadd.xlane.f32.xlu0 %v965
        %v967 = vpop.xlane.xlu0 %966
        %v968 = vsel %vm670, %v963, 0.0
        %969 = vadd.xlane.f32.xlu0 %v968
        %v970 = vpop.xlane.xlu0 %969
        %v971 = vsel %vm670, %v964, 0.0
        %972 = vadd.xlane.f32.xlu0 %v971
        %v973 = vpop.xlane.xlu0 %972
        %v974 = vmul.f32 %v967, %v680
        %v975 = vmul.f32 %v970, %v680
        %v976 = vmul.f32 %v973, %v680
        %v977 = vadd.f32 %v974, 1e-05
        %v978 = vadd.f32 %v975, 1e-05
        %v979 = vadd.f32 %v976, 1e-05
        %v980 = vrsqrt.pop %v977
        %v981 = vrsqrt.pop %v978
        %v982 = vrsqrt.pop %v979
        %v983 = vmul.f32 %v959, %v980
        %v984 = vmul.f32 %v960, %v981
        %v985 = vmul.f32 %v961, %v982
        %v987 = vlaneseq
        %v988 = vshrl.u32 %v987, 7
        %v989 = vsub.s32 0, %v988
        %v990 = vrot.slane %v944, %v989
        %v992 = vmul.f32 %v983, %v990
        %v993 = vmul.f32 %v984, %v990
        %v994 = vmul.f32 %v985, %v990
        %v996 = vlaneseq
        %v997 = vshrl.u32 %v996, 7
        %v998 = vsub.s32 0, %v997
        %v999 = vrot.slane %v946, %v998
        %v1001 = vadd.f32 %v992, %v999
        %v1002 = vadd.f32 %v993, %v999
        %v1003 = vadd.f32 %v994, %v999
        %v1004 = vpack.c.bf16 %v1002, %v1001
        %v1005 = vpack.c.bf16 %v1003, %v1003
        %s1006 = scalar_lea.vmem %s7, 32
        %v1007 = vld [vmem:[%s1006] sm:$0xf]
        %v1008 = vld [vmem:[%s1006 + $0x4] sm:$0xf]
        %v1009 = vld [vmem:[%s1006 + $0x8] sm:$0xf]
        %v1010 = vld [vmem:[%s1006 + $0xc] sm:$0xf]
        %v1011 = vld [vmem:[%s1006 + $0x10] sm:$0xf]
        %v1012 = vld [vmem:[%s1006 + $0x14] sm:$0xf]
        %v1013 = vld [vmem:[%s1006 + $0x18] sm:$0xf]
        %v1014 = vld [vmem:[%s1006 + $0x1c] sm:$0xf]
        %s1015 = scalar_lea.vmem %s8, 1
        %v1016 = vld [vmem:[%s1015] sm:$0x1]
        %v1018 = vlaneseq
        %v1019 = vshrl.u32 %v1018, 7
        %v1020 = vsub.s32 0, %v1019
        %v1021 = vrot.slane %v1016, %v1020
        %v1031 = vunpack.c.l.b16 %v1007
        %v1032 = vunpack.c.l.b16 %v1008
        %v1033 = vunpack.c.l.b16 %v1009
        %v1034 = vunpack.c.l.b16 %v1010
        %v1035 = vunpack.c.l.b16 %v1011
        %v1036 = vunpack.c.l.b16 %v1012
        %v1037 = vunpack.c.l.b16 %v1013
        %v1038 = vunpack.c.l.b16 %v1014
        %v1039 = vpack.c.b16 %v1032, %v1031
        %v1040 = vpack.c.b16 %v1034, %v1033
        %v1041 = vpack.c.b16 %v1036, %v1035
        %v1042 = vpack.c.b16 %v1038, %v1037
        %v1048 = vsel %vm670, %v1004, 0
        %v1051 = vsel %vm670, %v1005, 0
        %1053 = vmatprep.subr.bf16.mxu0 0
        %1054 = vmatpush1.bf16.msra.mxu0 %v1039
        %1055 = vmatprep.subr.bf16.mxu0 0
        %1056 = vmatpush1.bf16.msra.mxu0 %v1040
        %1057 = vmatprep.subr.bf16.mxu0 0
        %1058 = vmatpush1.bf16.msra.mxu0 %v1041
        %1059 = vmatprep.subr.bf16.mxu0 0
        %1060 = vmatpush1.bf16.msra.mxu0 %v1042
        %1061 = vmatprep.subr.bf16.mxu0 0
        %1062 = vmatpush1.bf16.msra.mxu0 0
        %1063 = vmatprep.subr.bf16.mxu0 0
        %1064 = vmatpush1.bf16.msra.mxu0 0
        %1065 = vmatprep.subr.bf16.mxu0 0
        %1066 = vmatpush1.bf16.msra.mxu0 0
        %1067 = vmatprep.subr.bf16.mxu0 0
        %1068 = vmatpush1.bf16.msra.mxu0 0
        %1069 = vmatprep.subr.bf16.mxu0 0
        %1070 = vmatpush1.bf16.msra.mxu0 0
        %1071 = vmatprep.subr.bf16.mxu0 0
        %1072 = vmatpush1.bf16.msra.mxu0 0
        %1073 = vmatprep.subr.bf16.mxu0 0
        %1074 = vmatpush1.bf16.msra.mxu0 0
        %1075 = vmatprep.subr.bf16.mxu0 0
        %1076 = vmatpush1.bf16.msra.mxu0 0
        %1077 = vmatprep.subr.bf16.mxu0 0
        %1078 = vmatpush1.bf16.msra.mxu0 0
        %1079 = vmatprep.subr.bf16.mxu0 0
        %1080 = vmatpush1.bf16.msra.mxu0 0
        %1081 = vmatprep.subr.bf16.mxu0 0
        %1082 = vmatpush1.bf16.msra.mxu0 0
        %1083 = vmatprep.subr.bf16.mxu0 0
        %1084 = vmatpush1.bf16.msra.mxu0 0
        %1085 = vmatprep.mubr.bf16.mxu0 0
        %1086 = vmatmul.mubr.bf16.gmra.mrb[0].mxu0 %v1048
        %v1087 = vpop.f32.mrb[0].mxu0
        %v1088 = vadd.f32 %v1021, %v1087
        %v1089 = vpop.f32.mrb[0].mxu0
        %v1090 = vpop.f32.mrb[0].mxu0
        %v1091 = vadd.f32 %v1021, %v1090
        %v1092 = vpop.f32.mrb[0].mxu0
        %1093 = vmatprep.mubr.bf16.mxu0 0
        %1094 = vmatmul.mubr.bf16.gmra.mrb[0].mxu0 %v1051
        %v1095 = vpop.f32.mrb[0].mxu0
        %v1096 = vadd.f32 %v1021, %v1095
        %v1097 = vpop.f32.mrb[0].mxu0
        %v1098 = vpop.f32.mrb[0].mxu0
        %v1099 = vpop.f32.mrb[0].mxu0
        %1100 = vdwg.mxu0
        %v1101 = vxor.u32 %v1088, 2147483648
        %v1102 = vxor.u32 %v1091, 2147483648
        %v1103 = vxor.u32 %v1096, 2147483648
        %v1104 = vmul.f32 %v1101, 1.442695
        %v1105 = vpow.pop %v1104
        %v1106 = vmul.f32 %v1102, 1.442695
        %v1107 = vpow.pop %v1106
        %v1108 = vmul.f32 %v1103, 1.442695
        %v1109 = vpow.pop %v1108
        %v1110 = vadd.f32 %v1105, 1.0
        %v1111 = vadd.f32 %v1107, 1.0
        %v1112 = vadd.f32 %v1109, 1.0
        %v1113 = vrcp.pop %v1110
        %v1114 = vmul.f32 1.0, %v1113
        %v1115 = vrcp.pop %v1111
        %v1116 = vmul.f32 1.0, %v1115
        %v1117 = vrcp.pop %v1112
        %v1118 = vmul.f32 1.0, %v1117
        %v1119 = vmul.f32 %v1088, %v1114
        %v1120 = vmul.f32 %v1091, %v1116
        %v1121 = vmul.f32 %v1096, %v1118
        %v1122 = vpack.c.bf16 %v1120, %v1119
        %v1123 = vpack.c.bf16 %v1121, %v1121
        %s1124 = scalar_lea.vmem %s9, 32
        %v1125 = vld [vmem:[%s1124] sm:$0xf]
        %v1126 = vld [vmem:[%s1124 + $0x4] sm:$0xf]
        %v1127 = vld [vmem:[%s1124 + $0x8] sm:$0xf]
        %v1128 = vld [vmem:[%s1124 + $0xc] sm:$0xf]
        %v1129 = vld [vmem:[%s1124 + $0x10] sm:$0xf]
        %v1130 = vld [vmem:[%s1124 + $0x14] sm:$0xf]
        %v1131 = vld [vmem:[%s1124 + $0x18] sm:$0xf]
        %v1132 = vld [vmem:[%s1124 + $0x1c] sm:$0xf]
        %s1133 = scalar_lea.vmem %s10, 1
        %v1134 = vld [vmem:[%s1133] sm:$0x1]
        %v1136 = vlaneseq
        %v1137 = vshrl.u32 %v1136, 7
        %v1138 = vsub.s32 0, %v1137
        %v1139 = vrot.slane %v1134, %v1138
        %v1149 = vunpack.c.l.b16 %v1125
        %v1150 = vunpack.c.l.b16 %v1126
        %v1151 = vunpack.c.l.b16 %v1127
        %v1152 = vunpack.c.l.b16 %v1128
        %v1153 = vunpack.c.l.b16 %v1129
        %v1154 = vunpack.c.l.b16 %v1130
        %v1155 = vunpack.c.l.b16 %v1131
        %v1156 = vunpack.c.l.b16 %v1132
        %v1157 = vpack.c.b16 %v1150, %v1149
        %v1158 = vpack.c.b16 %v1152, %v1151
        %v1159 = vpack.c.b16 %v1154, %v1153
        %v1160 = vpack.c.b16 %v1156, %v1155
        %v1166 = vsel %vm670, %v1122, 0
        %v1169 = vsel %vm670, %v1123, 0
        %1171 = vmatprep.subr.bf16.mxu0 0
        %1172 = vmatpush1.bf16.msra.mxu0 %v1157
        %1173 = vmatprep.subr.bf16.mxu0 0
        %1174 = vmatpush1.bf16.msra.mxu0 %v1158
        %1175 = vmatprep.subr.bf16.mxu0 0
        %1176 = vmatpush1.bf16.msra.mxu0 %v1159
        %1177 = vmatprep.subr.bf16.mxu0 0
        %1178 = vmatpush1.bf16.msra.mxu0 %v1160
        %1179 = vmatprep.subr.bf16.mxu0 0
        %1180 = vmatpush1.bf16.msra.mxu0 0
        %1181 = vmatprep.subr.bf16.mxu0 0
        %1182 = vmatpush1.bf16.msra.mxu0 0
        %1183 = vmatprep.subr.bf16.mxu0 0
        %1184 = vmatpush1.bf16.msra.mxu0 0
        %1185 = vmatprep.subr.bf16.mxu0 0
        %1186 = vmatpush1.bf16.msra.mxu0 0
        %1187 = vmatprep.subr.bf16.mxu0 0
        %1188 = vmatpush1.bf16.msra.mxu0 0
        %1189 = vmatprep.subr.bf16.mxu0 0
        %1190 = vmatpush1.bf16.msra.mxu0 0
        %1191 = vmatprep.subr.bf16.mxu0 0
        %1192 = vmatpush1.bf16.msra.mxu0 0
        %1193 = vmatprep.subr.bf16.mxu0 0
        %1194 = vmatpush1.bf16.msra.mxu0 0
        %1195 = vmatprep.subr.bf16.mxu0 0
        %1196 = vmatpush1.bf16.msra.mxu0 0
        %1197 = vmatprep.subr.bf16.mxu0 0
        %1198 = vmatpush1.bf16.msra.mxu0 0
        %1199 = vmatprep.subr.bf16.mxu0 0
        %1200 = vmatpush1.bf16.msra.mxu0 0
        %1201 = vmatprep.subr.bf16.mxu0 0
        %1202 = vmatpush1.bf16.msra.mxu0 0
        %1203 = vmatprep.mubr.bf16.mxu0 0
        %1204 = vmatmul.mubr.bf16.gmra.mrb[0].mxu0 %v1166
        %v1205 = vpop.f32.mrb[0].mxu0
        %v1206 = vadd.f32 %v1139, %v1205
        %v1207 = vpop.f32.mrb[0].mxu0
        %v1208 = vpop.f32.mrb[0].mxu0
        %v1209 = vadd.f32 %v1139, %v1208
        %v1210 = vpop.f32.mrb[0].mxu0
        %1211 = vmatprep.mubr.bf16.mxu0 0
        %1212 = vmatmul.mubr.bf16.gmra.mrb[0].mxu0 %v1169
        %v1213 = vpop.f32.mrb[0].mxu0
        %v1214 = vadd.f32 %v1139, %v1213
        %v1215 = vpop.f32.mrb[0].mxu0
        %v1216 = vpop.f32.mrb[0].mxu0
        %v1217 = vpop.f32.mrb[0].mxu0
        %1218 = vdwg.mxu0
        %v1219 = vadd.f32 %v940, %v1206
        %v1220 = vadd.f32 %v941, %v1209
        %v1221 = vadd.f32 %v942, %v1214
        %v1222 = vld [vmem:[%s11] sm:$0x1]
        %v1223 = vld [vmem:[%s12] sm:$0x1]
        %v1224 = vsel %vm670, %v1219, 0.0
        %1225 = vadd.xlane.f32.xlu0 %v1224
        %v1226 = vpop.xlane.xlu0 %1225
        %v1227 = vsel %vm670, %v1220, 0.0
        %1228 = vadd.xlane.f32.xlu0 %v1227
        %v1229 = vpop.xlane.xlu0 %1228
        %v1230 = vsel %vm670, %v1221, 0.0
        %1231 = vadd.xlane.f32.xlu0 %v1230
        %v1232 = vpop.xlane.xlu0 %1231
        %v1233 = vmul.f32 %v1226, %v680
        %v1234 = vmul.f32 %v1229, %v680
        %v1235 = vmul.f32 %v1232, %v680
        %v1236 = vsub.f32 %v1219, %v1233
        %v1237 = vsub.f32 %v1220, %v1234
        %v1238 = vsub.f32 %v1221, %v1235
        %v1239 = vmul.f32 %v1236, %v1236
        %v1240 = vmul.f32 %v1237, %v1237
        %v1241 = vmul.f32 %v1238, %v1238
        %v1242 = vsel %vm670, %v1239, 0.0
        %1243 = vadd.xlane.f32.xlu0 %v1242
        %v1244 = vpop.xlane.xlu0 %1243
        %v1245 = vsel %vm670, %v1240, 0.0
        %1246 = vadd.xlane.f32.xlu0 %v1245
        %v1247 = vpop.xlane.xlu0 %1246
        %v1248 = vsel %vm670, %v1241, 0.0
        %1249 = vadd.xlane.f32.xlu0 %v1248
        %v1250 = vpop.xlane.xlu0 %1249
        %v1251 = vmul.f32 %v1244, %v680
        %v1252 = vmul.f32 %v1247, %v680
        %v1253 = vmul.f32 %v1250, %v680
        %v1254 = vadd.f32 %v1251, 1e-05
        %v1255 = vadd.f32 %v1252, 1e-05
        %v1256 = vadd.f32 %v1253, 1e-05
        %v1257 = vrsqrt.pop %v1254
        %v1258 = vrsqrt.pop %v1255
        %v1259 = vrsqrt.pop %v1256
        %v1260 = vmul.f32 %v1236, %v1257
        %v1261 = vmul.f32 %v1237, %v1258
        %v1262 = vmul.f32 %v1238, %v1259
        %v1264 = vlaneseq
        %v1265 = vshrl.u32 %v1264, 7
        %v1266 = vsub.s32 0, %v1265
        %v1267 = vrot.slane %v1222, %v1266
        %v1269 = vmul.f32 %v1260, %v1267
        %v1270 = vmul.f32 %v1261, %v1267
        %v1271 = vmul.f32 %v1262, %v1267
        %v1273 = vlaneseq
        %v1274 = vshrl.u32 %v1273, 7
        %v1275 = vsub.s32 0, %v1274
        %v1276 = vrot.slane %v1223, %v1275
        %v1278 = vadd.f32 %v1269, %v1276
        %v1279 = vadd.f32 %v1270, %v1276
        %v1280 = vadd.f32 %v1271, %v1276
        %v1281 = vpack.c.bf16 %v1279, %v1278
        %v1282 = vpack.c.bf16 %v1280, %v1280
        %v1283 = vld [vmem:[%s13] sm:$0xf]
        %v1284 = vld [vmem:[%s13 + $0x4] sm:$0xf]
        %v1285 = vld [vmem:[%s13 + $0x8] sm:$0xf]
        %v1286 = vld [vmem:[%s13 + $0xc] sm:$0xf]
        %v1287 = vld [vmem:[%s13 + $0x10] sm:$0xf]
        %v1288 = vld [vmem:[%s13 + $0x14] sm:$0xf]
        %v1289 = vld [vmem:[%s13 + $0x18] sm:$0xf]
        %v1290 = vld [vmem:[%s13 + $0x1c] sm:$0xf]
        %v1291 = vld [vmem:[%s14] sm:$0x1]
        %v1293 = vlaneseq
        %v1294 = vshrl.u32 %v1293, 7
        %v1295 = vsub.s32 0, %v1294
        %v1296 = vrot.slane %v1291, %v1295
        %v1306 = vunpack.c.l.b16 %v1283
        %v1307 = vunpack.c.l.b16 %v1284
        %v1308 = vunpack.c.l.b16 %v1285
        %v1309 = vunpack.c.l.b16 %v1286
        %v1310 = vunpack.c.l.b16 %v1287
        %v1311 = vunpack.c.l.b16 %v1288
        %v1312 = vunpack.c.l.b16 %v1289
        %v1313 = vunpack.c.l.b16 %v1290
        %v1314 = vpack.c.b16 %v1307, %v1306
        %v1315 = vpack.c.b16 %v1309, %v1308
        %v1316 = vpack.c.b16 %v1311, %v1310
        %v1317 = vpack.c.b16 %v1313, %v1312
        %v1323 = vsel %vm670, %v1281, 0
        %v1326 = vsel %vm670, %v1282, 0
        %1328 = vmatprep.subr.bf16.mxu0 0
        %1329 = vmatpush1.bf16.msra.mxu0 %v1314
        %1330 = vmatprep.subr.bf16.mxu0 0
        %1331 = vmatpush1.bf16.msra.mxu0 %v1315
        %1332 = vmatprep.subr.bf16.mxu0 0
        %1333 = vmatpush1.bf16.msra.mxu0 %v1316
        %1334 = vmatprep.subr.bf16.mxu0 0
        %1335 = vmatpush1.bf16.msra.mxu0 %v1317
        %1336 = vmatprep.subr.bf16.mxu0 0
        %1337 = vmatpush1.bf16.msra.mxu0 0
        %1338 = vmatprep.subr.bf16.mxu0 0
        %1339 = vmatpush1.bf16.msra.mxu0 0
        %1340 = vmatprep.subr.bf16.mxu0 0
        %1341 = vmatpush1.bf16.msra.mxu0 0
        %1342 = vmatprep.subr.bf16.mxu0 0
        %1343 = vmatpush1.bf16.msra.mxu0 0
        %1344 = vmatprep.subr.bf16.mxu0 0
        %1345 = vmatpush1.bf16.msra.mxu0 0
        %1346 = vmatprep.subr.bf16.mxu0 0
        %1347 = vmatpush1.bf16.msra.mxu0 0
        %1348 = vmatprep.subr.bf16.mxu0 0
        %1349 = vmatpush1.bf16.msra.mxu0 0
        %1350 = vmatprep.subr.bf16.mxu0 0
        %1351 = vmatpush1.bf16.msra.mxu0 0
        %1352 = vmatprep.subr.bf16.mxu0 0
        %1353 = vmatpush1.bf16.msra.mxu0 0
        %1354 = vmatprep.subr.bf16.mxu0 0
        %1355 = vmatpush1.bf16.msra.mxu0 0
        %1356 = vmatprep.subr.bf16.mxu0 0
        %1357 = vmatpush1.bf16.msra.mxu0 0
        %1358 = vmatprep.subr.bf16.mxu0 0
        %1359 = vmatpush1.bf16.msra.mxu0 0
        %1360 = vmatprep.mubr.bf16.mxu0 0
        %1361 = vmatmul.mubr.bf16.gmra.mrb[0].mxu0 %v1323
        %v1362 = vpop.f32.mrb[0].mxu0
        %v1363 = vadd.f32 %v1296, %v1362
        %v1364 = vpop.f32.mrb[0].mxu0
        %v1365 = vpop.f32.mrb[0].mxu0
        %v1366 = vadd.f32 %v1296, %v1365
        %v1367 = vpop.f32.mrb[0].mxu0
        %1368 = vmatprep.mubr.bf16.mxu0 0
        %1369 = vmatmul.mubr.bf16.gmra.mrb[0].mxu0 %v1326
        %v1370 = vpop.f32.mrb[0].mxu0
        %v1371 = vadd.f32 %v1296, %v1370
        %v1372 = vpop.f32.mrb[0].mxu0
        %v1373 = vpop.f32.mrb[0].mxu0
        %v1374 = vpop.f32.mrb[0].mxu0
        %1375 = vdwg.mxu0
        %v1376 = vld [vmem:[%s570] sm:$0xff]
        %v1377 = vld [vmem:[%s570 + $0x8] sm:$0xff]
        %v1378 = vld [vmem:[%s570 + $0x10] sm:$0xff]
        %1382 = vrot.lane.b32.xlu0 %v1376, 8
        %v1383 = vpop.permute.xlu0 %1382
        %1384 = vrot.lane.b32.xlu0 %v1377, 8
        %v1385 = vpop.permute.xlu0 %1384
        %1386 = vrot.lane.b32.xlu0 %v1378, 8
        %v1387 = vpop.permute.xlu0 %1386
        %1391 = vrot.lane.b32.xlu0 %v1376, 16
        %v1392 = vpop.permute.xlu0 %1391
        %1393 = vrot.lane.b32.xlu0 %v1377, 16
        %v1394 = vpop.permute.xlu0 %1393
        %1395 = vrot.lane.b32.xlu0 %v1378, 16
        %v1396 = vpop.permute.xlu0 %1395
        %1400 = vrot.lane.b32.xlu0 %v1376, 24
        %v1401 = vpop.permute.xlu0 %1400
        %1402 = vrot.lane.b32.xlu0 %v1377, 24
        %v1403 = vpop.permute.xlu0 %1402
        %1404 = vrot.lane.b32.xlu0 %v1378, 24
        %v1405 = vpop.permute.xlu0 %1404
        %vm1409 = vcmask 64512
        %v1410 = vsel %vm1409, %v1376, %v1383
        %v1411 = vsel %vm1409, %v1377, %v1385
        %v1412 = vsel %vm1409, %v1378, %v1387
        %vm1413 = vcmask 130048
        %v1414 = vsel %vm1413, %v1410, %v1392
        %v1415 = vsel %vm1413, %v1411, %v1394
        %v1416 = vsel %vm1413, %v1412, %v1396
        %vm1417 = vcmask 195584
        %v1418 = vsel %vm1417, %v1414, %v1401
        %v1419 = vsel %vm1417, %v1415, %v1403
        %v1420 = vsel %vm1417, %v1416, %v1405
        %v1421 = vmax.f32 %v1363, -11.512925
        %v1422 = vmax.f32 %v1366, -11.512925
        %v1423 = vmax.f32 %v1371, -11.512925
        %v1424 = vsub.f32 %v1418, %v1363
        %v1425 = vsub.f32 %v1419, %v1366
        %v1426 = vsub.f32 %v1420, %v1371
        %v1427 = vsub.f32 0.0, %v1421
        %v1428 = vsub.f32 0.0, %v1422
        %v1429 = vsub.f32 0.0, %v1423
        %v1430 = vmul.f32 %v1427, 1.442695
        %v1431 = vpow.pop %v1430
        %v1432 = vmul.f32 %v1428, 1.442695
        %v1433 = vpow.pop %v1432
        %v1434 = vmul.f32 %v1429, 1.442695
        %v1435 = vpow.pop %v1434
        %1439 = vrot.lane.b32.xlu0 %v1431, 96
        %v1440 = vpop.permute.xlu0 %1439
        %1441 = vrot.lane.b32.xlu0 %v1433, 96
        %v1442 = vpop.permute.xlu0 %1441
        %1443 = vrot.lane.b32.xlu0 %v1435, 96
        %v1444 = vpop.permute.xlu0 %1443
        %v1448 = vmul.f32 %v1424, %v1440
        %v1449 = vmul.f32 %v1425, %v1442
        %v1450 = vmul.f32 %v1426, %v1444
        %v1451 = vld [vmem:[%s15] sm:$0xff]
        %v1452 = vld [vmem:[%s15 + $0x8] sm:$0xff]
        %v1453 = vld [vmem:[%s15 + $0x10] sm:$0xff]
        %v1454 = vld [vmem:[%s15 + $0x18] sm:$0xff]
        %v1455 = vmul.f32 %v1448, %v1448
        %v1456 = vmul.f32 %v1449, %v1449
        %v1457 = vmul.f32 %v1450, %v1450
        %v1459 = vsel %vm613, %v1455, 0
        %v1462 = vsel %vm613, %v1456, 0
        %v1465 = vsel %vm613, %v1457, 0
        %1467 = vmatprep.subr.mxu0 0.0
        %1468 = vmatpush1.msra.mxu0 %v1451
        %1469 = vmatprep.subr.mxu0 0.0
        %1470 = vmatpush1.msra.mxu0 %v1452
        %1471 = vmatprep.subr.mxu0 0.0
        %1472 = vmatpush1.msra.mxu0 %v1453
        %1473 = vmatprep.subr.mxu0 0.0
        %1474 = vmatpush1.msra.mxu0 %v1454
        %1475 = vmatprep.subr.mxu0 0.0
        %1476 = vmatpush1.msra.mxu0 0.0
        %1477 = vmatprep.subr.mxu0 0.0
        %1478 = vmatpush1.msra.mxu0 0.0
        %1479 = vmatprep.subr.mxu0 0.0
        %1480 = vmatpush1.msra.mxu0 0.0
        %1481 = vmatprep.subr.mxu0 0.0
        %1482 = vmatpush1.msra.mxu0 0.0
        %1483 = vmatprep.subr.mxu0 0.0
        %1484 = vmatpush1.msra.mxu0 0.0
        %1485 = vmatprep.subr.mxu0 0.0
        %1486 = vmatpush1.msra.mxu0 0.0
        %1487 = vmatprep.subr.mxu0 0.0
        %1488 = vmatpush1.msra.mxu0 0.0
        %1489 = vmatprep.subr.mxu0 0.0
        %1490 = vmatpush1.msra.mxu0 0.0
        %1491 = vmatprep.subr.mxu0 0.0
        %1492 = vmatpush1.msra.mxu0 0.0
        %1493 = vmatprep.subr.mxu0 0.0
        %1494 = vmatpush1.msra.mxu0 0.0
        %1495 = vmatprep.subr.mxu0 0.0
        %1496 = vmatpush1.msra.mxu0 0.0
        %1497 = vmatprep.subr.mxu0 0.0
        %1498 = vmatpush1.msra.mxu0 0.0
        %1499 = vmatprep.subr.mxu0 0.0
        %1500 = vmatpush1.msra.mxu0 0.0
        %1501 = vmatprep.subr.mxu0 0.0
        %1502 = vmatpush1.msra.mxu0 0.0
        %1503 = vmatprep.subr.mxu0 0.0
        %1504 = vmatpush1.msra.mxu0 0.0
        %1505 = vmatprep.subr.mxu0 0.0
        %1506 = vmatpush1.msra.mxu0 0.0
        %1507 = vmatprep.subr.mxu0 0.0
        %1508 = vmatpush1.msra.mxu0 0.0
        %1509 = vmatprep.subr.mxu0 0.0
        %1510 = vmatpush1.msra.mxu0 0.0
        %1511 = vmatprep.subr.mxu0 0.0
        %1512 = vmatpush1.msra.mxu0 0.0
        %1513 = vmatprep.subr.mxu0 0.0
        %1514 = vmatpush1.msra.mxu0 0.0
        %1515 = vmatprep.subr.mxu0 0.0
        %1516 = vmatpush1.msra.mxu0 0.0
        %1517 = vmatprep.subr.mxu0 0.0
        %1518 = vmatpush1.msra.mxu0 0.0
        %1519 = vmatprep.subr.mxu0 0.0
        %1520 = vmatpush1.msra.mxu0 0.0
        %1521 = vmatprep.subr.mxu0 0.0
        %1522 = vmatpush1.msra.mxu0 0.0
        %1523 = vmatprep.subr.mxu0 0.0
        %1524 = vmatpush1.msra.mxu0 0.0
        %1525 = vmatprep.subr.mxu0 0.0
        %1526 = vmatpush1.msra.mxu0 0.0
        %1527 = vmatprep.subr.mxu0 0.0
        %1528 = vmatpush1.msra.mxu0 0.0
        %1529 = vmatprep.subr.mxu0 0.0
        %1530 = vmatpush1.msra.mxu0 0.0
        %1531 = vmatprep.mubr.f32.mxu0 0.0
        %1532 = vmatmul.mubr.f32.gmra.mrb[0].mxu0 %v1459
        %v1533 = vpop.f32.mrb[0].mxu0
        %v1534 = vadd.f32 0.0, %v1533
        %v1535 = vpop.f32.mrb[0].mxu0
        %1536 = vmatprep.mubr.f32.mxu0 0.0
        %1537 = vmatmul.mubr.f32.gmra.mrb[0].mxu0 %v1462
        %v1538 = vpop.f32.mrb[0].mxu0
        %v1539 = vadd.f32 0.0, %v1538
        %v1540 = vpop.f32.mrb[0].mxu0
        %1541 = vmatprep.mubr.f32.mxu0 0.0
        %1542 = vmatmul.mubr.f32.gmra.mrb[0].mxu0 %v1465
        %v1543 = vpop.f32.mrb[0].mxu0
        %v1544 = vadd.f32 0.0, %v1543
        %v1545 = vpop.f32.mrb[0].mxu0
        %1546 = vdwg.mxu0
        %1550 = vrot.lane.b32.xlu0 %v1421, 96
        %v1551 = vpop.permute.xlu0 %1550
        %1552 = vrot.lane.b32.xlu0 %v1422, 96
        %v1553 = vpop.permute.xlu0 %1552
        %1554 = vrot.lane.b32.xlu0 %v1423, 96
        %v1555 = vpop.permute.xlu0 %1554
        %v1556 = vsel %vm613, %v1551, 0
        %v1558 = vsel %vm613, %v1553, 0
        %v1560 = vsel %vm613, %v1555, 0
        %1562 = vmatprep.subr.mxu0 0.0
        %1563 = vmatpush1.msra.mxu0 %v1451
        %1564 = vmatprep.subr.mxu0 0.0
        %1565 = vmatpush1.msra.mxu0 %v1452
        %1566 = vmatprep.subr.mxu0 0.0
        %1567 = vmatpush1.msra.mxu0 %v1453
        %1568 = vmatprep.subr.mxu0 0.0
        %1569 = vmatpush1.msra.mxu0 %v1454
        %1570 = vmatprep.subr.mxu0 0.0
        %1571 = vmatpush1.msra.mxu0 0.0
        %1572 = vmatprep.subr.mxu0 0.0
        %1573 = vmatpush1.msra.mxu0 0.0
        %1574 = vmatprep.subr.mxu0 0.0
        %1575 = vmatpush1.msra.mxu0 0.0
        %1576 = vmatprep.subr.mxu0 0.0
        %1577 = vmatpush1.msra.mxu0 0.0
        %1578 = vmatprep.subr.mxu0 0.0
        %1579 = vmatpush1.msra.mxu0 0.0
        %1580 = vmatprep.subr.mxu0 0.0
        %1581 = vmatpush1.msra.mxu0 0.0
        %1582 = vmatprep.subr.mxu0 0.0
        %1583 = vmatpush1.msra.mxu0 0.0
        %1584 = vmatprep.subr.mxu0 0.0
        %1585 = vmatpush1.msra.mxu0 0.0
        %1586 = vmatprep.subr.mxu0 0.0
        %1587 = vmatpush1.msra.mxu0 0.0
        %1588 = vmatprep.subr.mxu0 0.0
        %1589 = vmatpush1.msra.mxu0 0.0
        %1590 = vmatprep.subr.mxu0 0.0
        %1591 = vmatpush1.msra.mxu0 0.0
        %1592 = vmatprep.subr.mxu0 0.0
        %1593 = vmatpush1.msra.mxu0 0.0
        %1594 = vmatprep.subr.mxu0 0.0
        %1595 = vmatpush1.msra.mxu0 0.0
        %1596 = vmatprep.subr.mxu0 0.0
        %1597 = vmatpush1.msra.mxu0 0.0
        %1598 = vmatprep.subr.mxu0 0.0
        %1599 = vmatpush1.msra.mxu0 0.0
        %1600 = vmatprep.subr.mxu0 0.0
        %1601 = vmatpush1.msra.mxu0 0.0
        %1602 = vmatprep.subr.mxu0 0.0
        %1603 = vmatpush1.msra.mxu0 0.0
        %1604 = vmatprep.subr.mxu0 0.0
        %1605 = vmatpush1.msra.mxu0 0.0
        %1606 = vmatprep.subr.mxu0 0.0
        %1607 = vmatpush1.msra.mxu0 0.0
        %1608 = vmatprep.subr.mxu0 0.0
        %1609 = vmatpush1.msra.mxu0 0.0
        %1610 = vmatprep.subr.mxu0 0.0
        %1611 = vmatpush1.msra.mxu0 0.0
        %1612 = vmatprep.subr.mxu0 0.0
        %1613 = vmatpush1.msra.mxu0 0.0
        %1614 = vmatprep.subr.mxu0 0.0
        %1615 = vmatpush1.msra.mxu0 0.0
        %1616 = vmatprep.subr.mxu0 0.0
        %1617 = vmatpush1.msra.mxu0 0.0
        %1618 = vmatprep.subr.mxu0 0.0
        %1619 = vmatpush1.msra.mxu0 0.0
        %1620 = vmatprep.subr.mxu0 0.0
        %1621 = vmatpush1.msra.mxu0 0.0
        %1622 = vmatprep.subr.mxu0 0.0
        %1623 = vmatpush1.msra.mxu0 0.0
        %1624 = vmatprep.subr.mxu0 0.0
        %1625 = vmatpush1.msra.mxu0 0.0
        %1626 = vmatprep.mubr.f32.mxu0 0.0
        %1627 = vmatmul.mubr.f32.gmra.mrb[0].mxu0 %v1556
        %v1628 = vpop.f32.mrb[0].mxu0
        %v1629 = vadd.f32 0.0, %v1628
        %v1630 = vpop.f32.mrb[0].mxu0
        %1631 = vmatprep.mubr.f32.mxu0 0.0
        %1632 = vmatmul.mubr.f32.gmra.mrb[0].mxu0 %v1558
        %v1633 = vpop.f32.mrb[0].mxu0
        %v1634 = vadd.f32 0.0, %v1633
        %v1635 = vpop.f32.mrb[0].mxu0
        %1636 = vmatprep.mubr.f32.mxu0 0.0
        %1637 = vmatmul.mubr.f32.gmra.mrb[0].mxu0 %v1560
        %v1638 = vpop.f32.mrb[0].mxu0
        %v1639 = vadd.f32 0.0, %v1638
        %v1640 = vpop.f32.mrb[0].mxu0
        %1641 = vdwg.mxu0
        %v1642 = vmul.f32 %v1629, 2.0
        %v1643 = vmul.f32 %v1634, 2.0
        %v1644 = vmul.f32 %v1639, 2.0
        %v1645 = vadd.f32 %v1642, 29.40603
        %v1646 = vadd.f32 %v1643, 29.40603
        %v1647 = vadd.f32 %v1644, 29.40603
        %v1648 = vadd.f32 %v1645, %v1534
        %v1649 = vadd.f32 %v1646, %v1539
        %v1650 = vadd.f32 %v1647, %v1544
        %v1651 = vmul.f32 %v1648, -0.5
        %v1652 = vmul.f32 %v1649, -0.5
        %v1653 = vmul.f32 %v1650, -0.5
        %vm1654 = vcmask 556544
        %v1655 = vsel %vm1654, %v1363, -inf
        %1656 = vmax.xlane.f32.xlu0 %v1655
        %v1657 = vpop.xlane.xlu0 %1656
        %v1658 = vsel %vm1654, %v1366, -inf
        %1659 = vmax.xlane.f32.xlu0 %v1658
        %v1660 = vpop.xlane.xlu0 %1659
        %v1661 = vsel %vm1654, %v1371, -inf
        %1662 = vmax.xlane.f32.xlu0 %v1661
        %v1663 = vpop.xlane.xlu0 %1662
        %v1664 = vsub.f32 %v1363, %v1657
        %v1665 = vsub.f32 %v1366, %v1660
        %v1666 = vsub.f32 %v1371, %v1663
        %v1667 = vmul.f32 %v1664, 1.442695
        %v1668 = vpow.pop %v1667
        %v1669 = vmul.f32 %v1665, 1.442695
        %v1670 = vpow.pop %v1669
        %v1671 = vmul.f32 %v1666, 1.442695
        %v1672 = vpow.pop %v1671
        %1676 = vrot.lane.b32.xlu0 %v1668, 64
        %v1677 = vpop.permute.xlu0 %1676
        %1678 = vrot.lane.b32.xlu0 %v1670, 64
        %v1679 = vpop.permute.xlu0 %1678
        %1680 = vrot.lane.b32.xlu0 %v1672, 64
        %v1681 = vpop.permute.xlu0 %1680
        %vm1685 = vcmask 31744
        %v1686 = vsel %vm1685, %v1677, 0.0
        %1687 = vadd.xlane.f32.xlu0 %v1686
        %v1688 = vpop.xlane.xlu0 %1687
        %v1689 = vsel %vm1685, %v1679, 0.0
        %1690 = vadd.xlane.f32.xlu0 %v1689
        %v1691 = vpop.xlane.xlu0 %1690
        %v1692 = vsel %vm1685, %v1681, 0.0
        %1693 = vadd.xlane.f32.xlu0 %v1692
        %v1694 = vpop.xlane.xlu0 %1693
        %v1695 = vlog2.pop %v1688
        %v1696 = vmul.f32 %v1695, 0.6931472
        %v1697 = vlog2.pop %v1691
        %v1698 = vmul.f32 %v1697, 0.6931472
        %v1699 = vlog2.pop %v1694
        %v1700 = vmul.f32 %v1699, 0.6931472
        %v1701 = vsub.f32 %v1664, %v1696
        %v1702 = vsub.f32 %v1665, %v1698
        %v1703 = vsub.f32 %v1666, %v1700
        %1707 = vrot.lane.b32.xlu0 %v1651, 64
        %v1708 = vpop.permute.xlu0 %1707
        %1709 = vrot.lane.b32.xlu0 %v1652, 64
        %v1710 = vpop.permute.xlu0 %1709
        %1711 = vrot.lane.b32.xlu0 %v1653, 64
        %v1712 = vpop.permute.xlu0 %1711
        %v1716 = vadd.f32 %v1701, %v1708
        %v1717 = vadd.f32 %v1702, %v1710
        %v1718 = vadd.f32 %v1703, %v1712
        %v1719 = vsel %vm1654, %v1716, -inf
        %1720 = vmax.xlane.f32.xlu0 %v1719
        %v1721 = vpop.xlane.xlu0 %1720
        %v1722 = vsel %vm1654, %v1717, -inf
        %1723 = vmax.xlane.f32.xlu0 %v1722
        %v1724 = vpop.xlane.xlu0 %1723
        %v1725 = vsel %vm1654, %v1718, -inf
        %1726 = vmax.xlane.f32.xlu0 %v1725
        %v1727 = vpop.xlane.xlu0 %1726
        %v1728 = vsub.f32 %v1716, %v1721
        %v1729 = vsub.f32 %v1717, %v1724
        %v1730 = vsub.f32 %v1718, %v1727
        %v1731 = vmul.f32 %v1728, 1.442695
        %v1732 = vpow.pop %v1731
        %v1733 = vmul.f32 %v1729, 1.442695
        %v1734 = vpow.pop %v1733
        %v1735 = vmul.f32 %v1730, 1.442695
        %v1736 = vpow.pop %v1735
        %1740 = vrot.lane.b32.xlu0 %v1732, 64
        %v1741 = vpop.permute.xlu0 %1740
        %1742 = vrot.lane.b32.xlu0 %v1734, 64
        %v1743 = vpop.permute.xlu0 %1742
        %1744 = vrot.lane.b32.xlu0 %v1736, 64
        %v1745 = vpop.permute.xlu0 %1744
        %v1749 = vsel %vm1685, %v1741, 0.0
        %1750 = vadd.xlane.f32.xlu0 %v1749
        %v1751 = vpop.xlane.xlu0 %1750
        %v1752 = vsel %vm1685, %v1743, 0.0
        %1753 = vadd.xlane.f32.xlu0 %v1752
        %v1754 = vpop.xlane.xlu0 %1753
        %v1755 = vsel %vm1685, %v1745, 0.0
        %1756 = vadd.xlane.f32.xlu0 %v1755
        %v1757 = vpop.xlane.xlu0 %1756
        %v1758 = vlog2.pop %v1751
        %v1759 = vmul.f32 %v1758, 0.6931472
        %v1760 = vlog2.pop %v1754
        %v1761 = vmul.f32 %v1760, 0.6931472
        %v1762 = vlog2.pop %v1757
        %v1763 = vmul.f32 %v1762, 0.6931472
        %v1764 = vadd.f32 %v1721, %v1759
        %v1765 = vadd.f32 %v1724, %v1761
        %v1766 = vadd.f32 %v1727, %v1763
        %v1767 = vsub.f32 0.0, %v1764
        %v1768 = vsub.f32 0.0, %v1765
        %v1769 = vsub.f32 0.0, %v1766
        %v1770 = vld [vmem:[%s576] sm:$0xff]
        %v1771 = vld [vmem:[%s576 + $0x8] sm:$0xff]
        %v1772 = vld [vmem:[%s576 + $0x10] sm:$0xff]
        %v1773 = vmul.f32 %v1767, %v1770
        %v1774 = vmul.f32 %v1768, %v1771
        %v1775 = vmul.f32 %v1769, %v1772
        %vm1776 = vcmask 7168
        %v1777 = vsel %vm1776, %v1773, 0.0
        %v1778 = vsel %vm1776, %v1774, 0.0
        %v1779 = vadd.f32 %v1777, %v1778
        %v1780 = vsel %vm1776, %v1775, 0.0
        %v1781 = vadd.f32 %v1779, %v1780
        %v1782 = vrot.slane %v1781, 4
        %v1783 = vadd.f32 %v1781, %v1782
        %v1784 = vrot.slane %v1783, 2
        %v1785 = vadd.f32 %v1783, %v1784
        %v1786 = vrot.slane %v1785, 1
        %v1787 = vadd.f32 %v1785, %v1786
        %v1788 = vsel %vm1776, %v1770, 0.0
        %v1789 = vsel %vm1776, %v1771, 0.0
        %v1790 = vadd.f32 %v1788, %v1789
        %v1791 = vsel %vm1776, %v1772, 0.0
        %v1792 = vadd.f32 %v1790, %v1791
        %v1793 = vrot.slane %v1792, 4
        %v1794 = vadd.f32 %v1792, %v1793
        %v1795 = vrot.slane %v1794, 2
        %v1796 = vadd.f32 %v1794, %v1795
        %v1797 = vrot.slane %v1796, 1
        %v1798 = vadd.f32 %v1796, %v1797
        %1800 = vrot.lane.b32.xlu0 %v1798, 1
        %v1801 = vpop.permute.xlu0 %1800
        %v1803 = vsel %vm1776, %v1787, %v1801
        %vm1804 = vcmask 8192
        %1805 = vst.msk [vmem:[%s559] sm:$0x1] %vm1804, %v1803
        %s1806 = sand.u32 %s390, 1
        %s1807 = scalar_lea.sflag [#allocation4], %s1806
        %s1808 = sand.u32 %s390, 1
        %s1809 = scalar_lea.vmem [#allocation5], %s1808
        // Predicated region
        $region89: #{tpu_custom_call.1} parent=83 // pred_check
          %p1810 = pneg %p400
        $region90: #{tpu_custom_call.1} parent=83 // pred_check_branch
          %1812 = sbr.rel (%p1810) target = $region92
        $region91: #{tpu_custom_call.1} parent=83 // pred_region
          %s1814 = ssub.s32 16, 16
          %1815 = vsyncadd %s1807, %s1814
          %s1816 = smul.addr %s31, 16
          %s1817 = scalar_lea.hbm %s16, %s1816
          %s1819 = sshll.u32 %s1809, 4
          %s1820 = int_to_ptr.vmem [resolvable:$true] %s1819
          %1822 = dma.vmem_to_hbm [thread:$0]  %s1820, 16, %s1817, %s1807
        $region92: #{tpu_custom_call.1} parent=83 // pred_fallthru
          _
      $region84: #{tpu_custom_call.1} parent=5 // pred_fallthru
        _
      %p1823 = scmp.le.s32.totalorder 2, %s26
      // Predicated region
      $region93: #{tpu_custom_call.1} parent=5 // pred_check
        %p1824 = pneg %p1823
      $region94: #{tpu_custom_call.1} parent=5 // pred_check_branch
        %1826 = sbr.rel (%p1824) target = $region96
      $region95: #{tpu_custom_call.1} parent=5 // pred_region
        %s1827 = ssub.s32 %s26, 2
        // Predicated region
        $region97: #{tpu_custom_call.1} parent=95 // pred_check
          %p1828 = pneg %p406
        $region98: #{tpu_custom_call.1} parent=95 // pred_check_branch
          %1830 = sbr.rel (%p1828) target = $region100
        $region99: #{tpu_custom_call.1} parent=95 // pred_region
          %s1831 = sand.u32 %s391, 1
          %s1832 = scalar_lea.sflag [#allocation4], %s1831
          %s1833 = sand.u32 %s391, 1
          %s1834 = scalar_lea.vmem [#allocation5], %s1833
          %1835 = dma.done %s1832, 16
        $region100: #{tpu_custom_call.1} parent=95 // pred_fallthru
          _
      $region96: #{tpu_custom_call.1} parent=5 // pred_fallthru
        _
    $region6: #{tpu_custom_call.1} parent=1 // loop_footer
      %s30 = sadd.s32 1, %s26
    $region7: #{tpu_custom_call.1} parent=1 // loop_footer_branch
      %25 = sbr.rel target = $region3
    $region8: #{tpu_custom_call.1} parent=1 // loop_exit
      _
    %1836 = vsyncpa [#allocation3], 1
    %s1837 = scalar_lea.sflag [#allocation3], 1
    %1838 = vsyncpa %s1837, 1
    %1839 = vsyncpa [#allocation4], 1
    %s1840 = scalar_lea.sflag [#allocation4], 1
    %1841 = vsyncpa %s1840, 1

</llo_original>
